<compile_context>
chip_gen: v5e
topology: v5e:2x2
jax: 0.10.0
libtpu: 0.0.40
codegen_flags: <defaults>
</compile_context>

<pallas_src>
import jax
import jax.numpy as jnp
import numpy as np
from jax.experimental import pallas as pl
from jax.experimental.pallas import tpu as pltpu


def _propagator_kernel(
    A_ref, state_ref, sc_ref,
    w_a_ref, b_a_ref, w_s_ref, w_t_ref,
    out_ref,
):
    Bt, N, D = out_ref.shape
    M = Bt * N
    mm_dtype = w_a_ref.dtype

    # a_t = bmm(A, state): one batched contraction for the whole block.
    # Note: at N=8 each per-batch MXU push is <10% filled; a block-diagonal A or
    # a VPU contraction would fill better, but at this size the kernel is not
    # MXU-cadence bound, so the simple (and known-good) einsum is kept.
    a_t = jnp.einsum("bij,bjd->bid", A_ref[...], state_ref[...],
                     preferred_element_type=jnp.float32)        # (Bt, N, D) f32

    # Merge (batch, node) -> rows while still f32 (N == 8-sublane tile, last dim
    # unchanged -> layout-free), THEN cast for the MXU.  Casting first would put
    # bf16 into 16-sublane packing and make the merge a hidden relayout copy.
    a2 = a_t.reshape(M, D).astype(mm_dtype)
    sc = sc_ref[...].reshape(M, D).astype(jnp.float32)           # elementwise in f32

    # Fused projections: a_t side covers r|z|transform (+ all biases),
    # state_cur side covers r|z.  Mathematically identical to cat + 3 Linears.
    a_side = (jnp.dot(a2, w_a_ref[...], preferred_element_type=jnp.float32)
              + b_a_ref[...])                                    # (M, 3D) f32
    s_side = jnp.dot(sc.astype(mm_dtype), w_s_ref[...],
                     preferred_element_type=jnp.float32)         # (M, 2D) f32

    r = jax.nn.sigmoid(a_side[:, :D] + s_side[:, :D])
    z = jax.nn.sigmoid(a_side[:, D:2 * D] + s_side[:, D:])
    # Keep the (r * state_cur) LHS — and hence this matmul — in f32 even on the
    # bf16 path: only w_t itself is quantized (review correctness note).
    h_hat = jnp.tanh(
        a_side[:, 2 * D:]
        + jnp.dot(r * sc, w_t_ref[...].astype(jnp.float32),
                  preferred_element_type=jnp.float32))

    out = (1.0 - z) * sc + z * h_hat
    out_ref[...] = out.reshape(Bt, N, D).astype(out_ref.dtype)


def _choose_block_b(B, N, D, *, mm_itemsize=4, out_itemsize=4,
                    num_tensorcores=1, vmem_budget=24 * 1024 * 1024):
    """Pick the batch-block size Bt.

    * Target >= 256 flattened (Bt*N) rows so the fused gate matmuls fill the
      256-wide v6e/v7x MXU M dimension (128 already fills the v5e MXU).
    * Stay inside a conservative VMEM budget, modelling the real (8,128)-padded
      tile footprint, the actual matmul itemsize (2 for bf16), double-buffered
      activation blocks and the resident weight blocks (matters on v7x 64 MiB).
    * Only force multiple grid steps when there is more than one TensorCore to
      feed (v7x).  On 1-TC v5e/v6e extra steps are a serial loop: ~0.35us each
      and a halved MXU M dimension.
    """
    pad = lambda x, m: ((x + m - 1) // m) * m
    lane = lambda x: pad(x, 128)
    sub = lambda x: pad(x, 8)

    # Double-buffered per-batch activation blocks: A + state (mm dtype),
    # state_cur + out (out dtype), padded to the (8,128) VMEM tile.
    per_b = (2 * (sub(N) * lane(N) + sub(N) * lane(D)) * mm_itemsize
             + 2 * 2 * sub(N) * lane(D) * out_itemsize)
    # Weight blocks have constant block indices (never re-fetched) but budget 2x
    # each to cover the pipeliner's buffer allocation.
    w_bytes = 2 * (sub(D) * lane(3 * D) + sub(1) * lane(3 * D)
                   + sub(D) * lane(2 * D) + sub(D) * lane(D)) * mm_itemsize
    cap = max(1, (vmem_budget - w_bytes) // per_b)

    want = max(1, pl.cdiv(256, N))          # rows to fill the 256-wide MXU
    bt = max(1, min(B, want, cap))
    if num_tensorcores > 1 and B >= num_tensorcores:
        bt = min(bt, max(1, B // num_tensorcores))
    while B % bt:
        bt -= 1
    return bt


def fuse_params(params, matmul_dtype=None):
    """Fuse the per-gate weights/biases ONCE (not per propagator call).

    Returns (w_a_all (D,3D), b_all (1,3D) f32, w_s_rz (D,2D), w_t_s (D,D)).
    Identical math to cat + 3 Linears, but 3 wide matmuls instead of 6 tiny ones.
    matmul_dtype=jnp.bfloat16 stores the weights in bf16 for the MXU (valid on
    v5e/v6e/v7x); accumulation and elementwise gate math stay f32 in the kernel.
    """
    (wr_a, wr_s, br), (wz_a, wz_s, bz), (wt_a, wt_s, bt) = params
    w_a_all = jnp.concatenate([wr_a, wz_a, wt_a], axis=1)               # (D, 3D)
    b_all = jnp.concatenate([br, bz, bt], axis=1).astype(jnp.float32)   # (1, 3D)
    w_s_rz = jnp.concatenate([wr_s, wz_s], axis=1)                      # (D, 2D)
    w_t_s = wt_s                                                        # (D, D)
    if matmul_dtype is not None:
        w_a_all = w_a_all.astype(matmul_dtype)
        w_s_rz = w_s_rz.astype(matmul_dtype)
        w_t_s = w_t_s.astype(matmul_dtype)
    return (w_a_all, b_all, w_s_rz, w_t_s)


def propagator_forward(state, state_cur, A, fused_params, *,
                       block_b=None, num_tensorcores=1):
    """state, state_cur: (B, N, D); A: (B, N, N). Returns (B, N, D).

    The MXU input dtype is taken from the fused weights; if it is narrower than
    the activations (e.g. bf16 weights, f32 activations), A and state are cast
    once here to halve their HBM/VMEM/DMA bytes.  Pass bf16 activations
    directly to skip even that cast.  state_cur (and all gate elementwise math)
    stays in its own dtype / f32.
    """
    B, N, D = state.shape
    w_a_all, b_all, w_s_rz, w_t_s = fused_params
    mm_dtype = w_a_all.dtype
    if A.dtype != mm_dtype:
        A = A.astype(mm_dtype)
    if state.dtype != mm_dtype:
        state = state.astype(mm_dtype)

    Bt = block_b if block_b is not None else _choose_block_b(
        B, N, D,
        mm_itemsize=w_a_all.dtype.itemsize,
        out_itemsize=state_cur.dtype.itemsize,
        num_tensorcores=num_tensorcores)
    assert B % Bt == 0, (B, Bt)
    grid = (B // Bt,)

    if grid[0] == 1:
        dims = ("arbitrary",)
    elif num_tensorcores > 1:
        # v7x: actually shard the batch axis across the 2 TensorCores; plain
        # "parallel" has near-zero measured effect.
        dims = (pltpu.CORE_PARALLEL,)
    else:
        dims = ("parallel",)

    batched = lambda shape: pl.BlockSpec(shape, lambda b: (b, 0, 0))
    shared = lambda shape: pl.BlockSpec(shape, lambda b: (0, 0))
    # Notes:
    #  * Weight blocks keep a constant block index, so the pipeliner does not
    #    re-fetch them across grid steps; single-buffering (pl.Buffered(1)) only
    #    becomes worth it for much larger D.
    #  * For very large N the (Bt, N, N) A block should gain a node grid axis to
    #    stay under v7x's 64 MiB VMEM; not needed at these sizes.
    #  * Output last dim D < 128 -> lane-masked vst; a lane-dense (M/4, 128)
    #    relayout is intentionally skipped (see header) — tiny gain here, real
    #    Mosaic shape-cast risk.

    return pl.pallas_call(
        _propagator_kernel,
        out_shape=jax.ShapeDtypeStruct((B, N, D), state_cur.dtype),
        grid=grid,
        in_specs=[
            batched((Bt, N, N)),     # A
            batched((Bt, N, D)),     # state
            batched((Bt, N, D)),     # state_cur
            shared((D, 3 * D)),      # fused a_t-side gate weights (r|z|t)
            shared((1, 3 * D)),      # fused biases
            shared((D, 2 * D)),      # fused state_cur-side weights (r|z)
            shared((D, D)),          # transform state_cur-side weight
        ],
        out_specs=batched((Bt, N, D)),
        compiler_params=pltpu.CompilerParams(dimension_semantics=dims),
    )(A, state, state_cur, w_a_all, b_all, w_s_rz, w_t_s)


def ggat_forward(prop_state, A, fused_params, **kw):
    """GGAT.forward at inference: dropout is identity, then the propagator is
    applied with state == state_cur.
    # TODO(synk): GraphAttentionLayer is not defined in the provided spec, so the
    # multi-head attention concat stage has no kernel here and is skipped.
    # TODO(synk): if the propagator is iterated over GGNN time steps, fuse the
    # step loop inside one kernel (state resident in VMEM, weights loaded once)
    # instead of one pallas_call + HBM round-trip per step.
    """
    return propagator_forward(prop_state, prop_state, A, fused_params, **kw)


def init_params(key, state_dim):
    """Deterministic init mimicking nn.Linear(state_dim*2, state_dim) defaults."""
    D = state_dim
    bound = 1.0 / np.sqrt(2 * D)
    keys = jax.random.split(key, 6)
    params = []
    for i in range(3):
        W = jax.random.uniform(keys[2 * i], (D, 2 * D), jnp.float32, -bound, bound)
        b = jax.random.uniform(keys[2 * i + 1], (D,), jnp.float32, -bound, bound)
        # split the concat axis and pre-transpose to (D_in, D_out)
        w_a = W[:, :D].T          # multiplies a_t
        w_s = W[:, D:].T          # multiplies state_cur (or r*state_cur)
        params.append((w_a, w_s, b.reshape(1, D)))
    return tuple(params)


def reference_forward(state, state_cur, A, params):
    (wr_a, wr_s, br), (wz_a, wz_s, bz), (wt_a, wt_s, bt) = params
    a_t = jnp.einsum("bij,bjd->bid", A, state)
    r = jax.nn.sigmoid(a_t @ wr_a + state_cur @ wr_s + br)
    z = jax.nn.sigmoid(a_t @ wz_a + state_cur @ wz_s + bz)
    h_hat = jnp.tanh(a_t @ wt_a + (r * state_cur) @ wt_s + bt)
    return (1.0 - z) * state_cur + z * h_hat


if __name__ == "__main__":
    B, N, D = 16, 8, 32  # batch, num nodes, state_dim
    key = jax.random.PRNGKey(0)
    k_state, k_cur, k_A, k_params = jax.random.split(key, 4)

    state = jax.random.normal(k_state, (B, N, D), jnp.float32)
    state_cur = jax.random.normal(k_cur, (B, N, D), jnp.float32)
    A = jax.random.normal(k_A, (B, N, N), jnp.float32)
    params = init_params(k_params, D)

    # Fused weights are built ONCE (hoisted out of the per-call wrapper).
    fused_f32 = fuse_params(params)
    fused_bf16 = fuse_params(params, matmul_dtype=jnp.bfloat16)

    # Propagator kernel vs pure-JAX reference (f32 path, exact semantics).
    out = jax.block_until_ready(propagator_forward(state, state_cur, A, fused_f32))
    ref = reference_forward(state, state_cur, A, params)
    np.testing.assert_allclose(np.asarray(out), np.asarray(ref), rtol=1e-5, atol=1e-5)

    # GGAT-style call (state == state_cur), same kernel.
    out_ggat = jax.block_until_ready(ggat_forward(state, A, fused_f32))
    ref_ggat = reference_forward(state, state, A, params)
    np.testing.assert_allclose(np.asarray(out_ggat), np.asarray(ref_ggat),
                               rtol=1e-5, atol=1e-5)

    # bf16 MXU-input path (valid on v5e/v6e/v7x); f32 accumulate + f32 gate math.
    out_bf16 = jax.block_until_ready(
        propagator_forward(state, state_cur, A, fused_bf16))
    assert np.all(np.isfinite(np.asarray(out_bf16)))
    np.testing.assert_allclose(np.asarray(out_bf16), np.asarray(ref),
                               rtol=1e-1, atol=1e-1)

    print("KERNEL_OK")
</pallas_src>

<mosaic_0001>
module attributes {stable_mosaic.version = 11 : i64} {
  func.func @_propagator_kernel(%arg0: i32, %arg1: memref<16x8x8xf32, #tpu.memory_space<vmem>>, %arg2: memref<16x8x32xf32, #tpu.memory_space<vmem>>, %arg3: memref<16x8x32xf32, #tpu.memory_space<vmem>>, %arg4: memref<32x96xf32, #tpu.memory_space<vmem>>, %arg5: memref<1x96xf32, #tpu.memory_space<vmem>>, %arg6: memref<32x64xf32, #tpu.memory_space<vmem>>, %arg7: memref<32x32xf32, #tpu.memory_space<vmem>>, %arg8: memref<16x8x32xf32, #tpu.memory_space<vmem>>) attributes {dimension_semantics = [#tpu.dimension_semantics<arbitrary>], iteration_bounds = array<i64: 1>, scalar_prefetch = 0 : i64, scratch_operands = 0 : i64, tpu.core_type = #tpu.core_type<tc>, window_params = [{transform_indices = @transform_0, window_bounds = array<i64: 16, 8, 8>}, {transform_indices = @transform_1, window_bounds = array<i64: 16, 8, 32>}, {transform_indices = @transform_2, window_bounds = array<i64: 16, 8, 32>}, {pipeline_mode = #tpu.pipeline_mode<synchronous>, transform_indices = @transform_3, window_bounds = array<i64: 32, 96>}, {pipeline_mode = #tpu.pipeline_mode<synchronous>, transform_indices = @transform_4, window_bounds = array<i64: 1, 96>}, {pipeline_mode = #tpu.pipeline_mode<synchronous>, transform_indices = @transform_5, window_bounds = array<i64: 32, 64>}, {pipeline_mode = #tpu.pipeline_mode<synchronous>, transform_indices = @transform_6, window_bounds = array<i64: 32, 32>}, {transform_indices = @transform_7, window_bounds = array<i64: 16, 8, 32>}]} {
    %c0 = arith.constant 0 : index
    %c0_0 = arith.constant 0 : index
    %c0_1 = arith.constant 0 : index
    %0 = vector.load %arg1[%c0, %c0_0, %c0_1] : memref<16x8x8xf32, #tpu.memory_space<vmem>>, vector<16x8x8xf32>
    %c0_2 = arith.constant 0 : index
    %c0_3 = arith.constant 0 : index
    %c0_4 = arith.constant 0 : index
    %1 = vector.load %arg2[%c0_2, %c0_3, %c0_4] : memref<16x8x32xf32, #tpu.memory_space<vmem>>, vector<16x8x32xf32>
    "tpu.trace_start"() <{level = 10 : i32, message = "bij,bjd->bid"}> : () -> ()
    %cst = arith.constant dense<0.000000e+00> : vector<16x8x32xf32>
    %2 = tpu.matmul %0, %1, %cst {dimension_numbers = #tpu.dot_dimension_numbers<[2], [1], [1], [2], [0, 0, 0, 1, 1, 2], [0], [0]>} : vector<16x8x8xf32>, vector<16x8x32xf32>, vector<16x8x32xf32> -> vector<16x8x32xf32>
    "tpu.trace_stop"() : () -> ()
    %3 = vector.shape_cast %2 : vector<16x8x32xf32> to vector<128x32xf32>
    %c0_5 = arith.constant 0 : index
    %c0_6 = arith.constant 0 : index
    %c0_7 = arith.constant 0 : index
    %4 = vector.load %arg3[%c0_5, %c0_6, %c0_7] : memref<16x8x32xf32, #tpu.memory_space<vmem>>, vector<16x8x32xf32>
    %5 = vector.shape_cast %4 : vector<16x8x32xf32> to vector<128x32xf32>
    %c0_8 = arith.constant 0 : index
    %c0_9 = arith.constant 0 : index
    %6 = vector.load %arg4[%c0_8, %c0_9] : memref<32x96xf32, #tpu.memory_space<vmem>>, vector<32x96xf32>
    %cst_10 = arith.constant dense<0.000000e+00> : vector<128x96xf32>
    %7 = tpu.matmul %3, %6, %cst_10 {dimension_numbers = #tpu.dot_dimension_numbers<[1], [0], [0], [1], [0, 0, 1, 1], [], []>} : vector<128x32xf32>, vector<32x96xf32>, vector<128x96xf32> -> vector<128x96xf32>
    %c0_11 = arith.constant 0 : index
    %c0_12 = arith.constant 0 : index
    %8 = vector.load %arg5[%c0_11, %c0_12] : memref<1x96xf32, #tpu.memory_space<vmem>>, vector<1x96xf32>
    %9 = vector.broadcast %8 : vector<1x96xf32> to vector<128x96xf32>
    %10 = arith.addf %7, %9 : vector<128x96xf32>
    %c0_13 = arith.constant 0 : index
    %c0_14 = arith.constant 0 : index
    %11 = vector.load %arg6[%c0_13, %c0_14] : memref<32x64xf32, #tpu.memory_space<vmem>>, vector<32x64xf32>
    %cst_15 = arith.constant dense<0.000000e+00> : vector<128x64xf32>
    %12 = tpu.matmul %5, %11, %cst_15 {dimension_numbers = #tpu.dot_dimension_numbers<[1], [0], [0], [1], [0, 0, 1, 1], [], []>} : vector<128x32xf32>, vector<32x64xf32>, vector<128x64xf32> -> vector<128x64xf32>
    %13 = vector.extract_strided_slice %10 {offsets = [0, 0], sizes = [128, 32], strides = [1, 1]} : vector<128x96xf32> to vector<128x32xf32>
    %14 = vector.extract_strided_slice %12 {offsets = [0, 0], sizes = [128, 32], strides = [1, 1]} : vector<128x64xf32> to vector<128x32xf32>
    %15 = arith.addf %13, %14 : vector<128x32xf32>
    %16 = arith.negf %15 : vector<128x32xf32>
    %17 = math.exp %16 : vector<128x32xf32>
    %cst_16 = arith.constant 1.000000e+00 : f32
    %18 = vector.broadcast %cst_16 : f32 to vector<128x32xf32>
    %19 = arith.addf %18, %17 : vector<128x32xf32>
    %20 = arith.divf %18, %19 : vector<128x32xf32>
    %21 = vector.extract_strided_slice %10 {offsets = [0, 32], sizes = [128, 32], strides = [1, 1]} : vector<128x96xf32> to vector<128x32xf32>
    %22 = vector.extract_strided_slice %12 {offsets = [0, 32], sizes = [128, 32], strides = [1, 1]} : vector<128x64xf32> to vector<128x32xf32>
    %23 = arith.addf %21, %22 : vector<128x32xf32>
    %24 = arith.negf %23 : vector<128x32xf32>
    %25 = math.exp %24 : vector<128x32xf32>
    %cst_17 = arith.constant 1.000000e+00 : f32
    %26 = vector.broadcast %cst_17 : f32 to vector<128x32xf32>
    %27 = arith.addf %26, %25 : vector<128x32xf32>
    %28 = arith.divf %26, %27 : vector<128x32xf32>
    %29 = vector.extract_strided_slice %10 {offsets = [0, 64], sizes = [128, 32], strides = [1, 1]} : vector<128x96xf32> to vector<128x32xf32>
    %30 = arith.mulf %20, %5 : vector<128x32xf32>
    %c0_18 = arith.constant 0 : index
    %c0_19 = arith.constant 0 : index
    %31 = vector.load %arg7[%c0_18, %c0_19] : memref<32x32xf32, #tpu.memory_space<vmem>>, vector<32x32xf32>
    %cst_20 = arith.constant dense<0.000000e+00> : vector<128x32xf32>
    %32 = tpu.matmul %30, %31, %cst_20 {dimension_numbers = #tpu.dot_dimension_numbers<[1], [0], [0], [1], [0, 0, 1, 1], [], []>} : vector<128x32xf32>, vector<32x32xf32>, vector<128x32xf32> -> vector<128x32xf32>
    %33 = arith.addf %29, %32 : vector<128x32xf32>
    %34 = math.tanh %33 : vector<128x32xf32>
    %cst_21 = arith.constant 1.000000e+00 : f32
    %35 = vector.broadcast %cst_21 : f32 to vector<128x32xf32>
    %36 = arith.subf %35, %28 : vector<128x32xf32>
    %37 = arith.mulf %36, %5 : vector<128x32xf32>
    %38 = arith.mulf %28, %34 : vector<128x32xf32>
    %39 = arith.addf %37, %38 : vector<128x32xf32>
    %40 = vector.shape_cast %39 : vector<128x32xf32> to vector<16x8x32xf32>
    %c0_22 = arith.constant 0 : index
    %c0_23 = arith.constant 0 : index
    %c0_24 = arith.constant 0 : index
    %41 = vector.load %arg8[%c0_22, %c0_23, %c0_24] : memref<16x8x32xf32, #tpu.memory_space<vmem>>, vector<16x8x32xf32>
    tpu.vector_store %arg8[%c0_22, %c0_23, %c0_24], %40 {strides = array<i32>} : memref<16x8x32xf32, #tpu.memory_space<vmem>>, vector<16x8x32xf32>,
    return
  }
  func.func @transform_0(%arg0: i32) -> (i32, i32, i32) {
    %c0_i32 = arith.constant 0 : i32
    %c0_i32_0 = arith.constant 0 : i32
    %c0_i32_1 = arith.constant 0 : i32
    return %arg0, %c0_i32, %c0_i32_0 : i32, i32, i32
  }
  func.func @transform_1(%arg0: i32) -> (i32, i32, i32) {
    %c0_i32 = arith.constant 0 : i32
    %c0_i32_0 = arith.constant 0 : i32
    %c0_i32_1 = arith.constant 0 : i32
    return %arg0, %c0_i32, %c0_i32_0 : i32, i32, i32
  }
  func.func @transform_2(%arg0: i32) -> (i32, i32, i32) {
    %c0_i32 = arith.constant 0 : i32
    %c0_i32_0 = arith.constant 0 : i32
    %c0_i32_1 = arith.constant 0 : i32
    return %arg0, %c0_i32, %c0_i32_0 : i32, i32, i32
  }
  func.func @transform_3(%arg0: i32) -> (i32, i32) {
    %c0_i32 = arith.constant 0 : i32
    %c0_i32_0 = arith.constant 0 : i32
    %c0_i32_1 = arith.constant 0 : i32
    return %c0_i32, %c0_i32_0 : i32, i32
  }
  func.func @transform_4(%arg0: i32) -> (i32, i32) {
    %c0_i32 = arith.constant 0 : i32
    %c0_i32_0 = arith.constant 0 : i32
    %c0_i32_1 = arith.constant 0 : i32
    return %c0_i32, %c0_i32_0 : i32, i32
  }
  func.func @transform_5(%arg0: i32) -> (i32, i32) {
    %c0_i32 = arith.constant 0 : i32
    %c0_i32_0 = arith.constant 0 : i32
    %c0_i32_1 = arith.constant 0 : i32
    return %c0_i32, %c0_i32_0 : i32, i32
  }
  func.func @transform_6(%arg0: i32) -> (i32, i32) {
    %c0_i32 = arith.constant 0 : i32
    %c0_i32_0 = arith.constant 0 : i32
    %c0_i32_1 = arith.constant 0 : i32
    return %c0_i32, %c0_i32_0 : i32, i32
  }
  func.func @transform_7(%arg0: i32) -> (i32, i32, i32) {
    %c0_i32 = arith.constant 0 : i32
    %c0_i32_0 = arith.constant 0 : i32
    %c0_i32_1 = arith.constant 0 : i32
    return %arg0, %c0_i32, %c0_i32_0 : i32, i32, i32
  }
}

</mosaic_0001>

<llo_original>
// kernel: tpu_custom_call.1
$region0: #{tpu_custom_call.1}
  #allocation0 [shape = 'u32[]', space=smem, size = 0x4, offset = 0x4, fixed_abs, tag = 'smem constant byte address 0x4 - core index']
  #allocation1 [shape = 'u32[72,128]{1,0:T(1,128)}', space=vmem, size = 0x9000, scoped, tag = 'internal scratch']
  %s0 = inlined_call_operand.vmem [shape: f32[16,8,8], index: 0, kind: input, shape index: {}]
  %s1 = inlined_call_operand.vmem [shape: f32[16,8,32], index: 1, kind: input, shape index: {}]
  %s2 = inlined_call_operand.hbm [shape: f32[16,8,32], index: 2, kind: input, shape index: {}]
  %s3 = inlined_call_operand.vmem [shape: f32[32,96], index: 3, kind: input, shape index: {}]
  %s4 = inlined_call_operand.vmem [shape: f32[1,96], index: 4, kind: input, shape index: {}]
  %s5 = inlined_call_operand.vmem [shape: f32[32,64], index: 5, kind: input, shape index: {}]
  %s6 = inlined_call_operand.hbm [shape: f32[32,32], index: 6, kind: input, shape index: {}]
  %s7 = inlined_call_operand.hbm [shape: f32[16,8,32], index: 7, kind: output, shape index: {}]
  %s8 = sld [smem:[#allocation0]]
  $region46: #{tpu_custom_call.1} parent=0
    _
  %s10 = ssub.s32 1, %s8
  %s11 = scalar_select 0, %s10, %s8
  $region1: #{tpu_custom_call.1} parent=0
    #allocation2 [shape = 'u8[65536]{0}', space=vmem, size = 0x10000, scoped, tag = 'input window, operand 2, single buffered']
    #allocation3 [shape = 's32[1]{0}', space=sflag, size = 0x4, scoped, tag = 'scoped memory for tpu_custom_call.1']
    #allocation4 [shape = 's32[1]{0}', space=sflag, size = 0x4, scoped, tag = 'scoped memory for tpu_custom_call.1']
    #allocation5 [shape = 'u8[16384]{0}', space=vmem, size = 0x4000, scoped, tag = 'input window, operand 6, single buffered']
    #allocation6 [shape = 's32[1]{0}', space=sflag, size = 0x4, scoped, tag = 'scoped memory for tpu_custom_call.1']
    #allocation7 [shape = 'u8[65536]{0}', space=vmem, size = 0x10000, scoped, tag = 'output window, operand 0, single buffered']
    %12 = vsyncpa [#allocation3], 0
    %13 = vsyncpa [#allocation6], 0
    %14 = vsyncpa [#allocation4], 0
    // Predicated region
    $region2: #{tpu_custom_call.1} parent=1 // pred_check
      _
    $region3: #{tpu_custom_call.1} parent=1 // pred_check_branch
      %16 = sbr.rel (0) target = $region5
    $region4: #{tpu_custom_call.1} parent=1 // pred_region
      _
    $region5: #{tpu_custom_call.1} parent=1 // pred_fallthru
      _
    // Predicated region
    $region6: #{tpu_custom_call.1} parent=1 // pred_check
      _
    $region7: #{tpu_custom_call.1} parent=1 // pred_check_branch
      %18 = sbr.rel (0) target = $region9
    $region8: #{tpu_custom_call.1} parent=1 // pred_region
      _
    $region9: #{tpu_custom_call.1} parent=1 // pred_fallthru
      _
    // Predicated region
    $region10: #{tpu_custom_call.1} parent=1 // pred_check
      _
    $region11: #{tpu_custom_call.1} parent=1 // pred_check_branch
      %20 = sbr.rel (0) target = $region13
    $region12: #{tpu_custom_call.1} parent=1 // pred_region
      %22 = vsyncadd [#allocation3], 0
      %s23 = sshll.u32 %s2, 4
      %s24 = int_to_ptr.hbm [resolvable:$true] %s23
      %s25 = sshll.u32 [#allocation2], 4
      %s26 = int_to_ptr.vmem [resolvable:$true] %s25
      %31 = dma.hbm_to_vmem [thread:$0]  %s24, 2048, %s26, [#allocation3], 128, 128, 8
    $region13: #{tpu_custom_call.1} parent=1 // pred_fallthru
      _
    // Predicated region
    $region14: #{tpu_custom_call.1} parent=1 // pred_check
      _
    $region15: #{tpu_custom_call.1} parent=1 // pred_check_branch
      %33 = sbr.rel (0) target = $region17
    $region16: #{tpu_custom_call.1} parent=1 // pred_region
      _
    $region17: #{tpu_custom_call.1} parent=1 // pred_fallthru
      _
    // Predicated region
    $region18: #{tpu_custom_call.1} parent=1 // pred_check
      _
    $region19: #{tpu_custom_call.1} parent=1 // pred_check_branch
      %35 = sbr.rel (0) target = $region21
    $region20: #{tpu_custom_call.1} parent=1 // pred_region
      _
    $region21: #{tpu_custom_call.1} parent=1 // pred_fallthru
      _
    // Predicated region
    $region22: #{tpu_custom_call.1} parent=1 // pred_check
      _
    $region23: #{tpu_custom_call.1} parent=1 // pred_check_branch
      %37 = sbr.rel (0) target = $region25
    $region24: #{tpu_custom_call.1} parent=1 // pred_region
      _
    $region25: #{tpu_custom_call.1} parent=1 // pred_fallthru
      _
    // Predicated region
    $region26: #{tpu_custom_call.1} parent=1 // pred_check
      _
    $region27: #{tpu_custom_call.1} parent=1 // pred_check_branch
      %39 = sbr.rel (0) target = $region29
    $region28: #{tpu_custom_call.1} parent=1 // pred_region
      %41 = vsyncadd [#allocation6], 0
      %s42 = sshll.u32 %s6, 4
      %s43 = int_to_ptr.hbm [resolvable:$true] %s42
      %s44 = sshll.u32 [#allocation5], 4
      %s45 = int_to_ptr.vmem [resolvable:$true] %s44
      %50 = dma.hbm_to_vmem [thread:$0]  %s43, 512, %s45, [#allocation6], 128, 128, 8
    $region29: #{tpu_custom_call.1} parent=1 // pred_fallthru
      _
    // Predicated region
    $region30: #{tpu_custom_call.1} parent=1 // pred_check
      _
    $region31: #{tpu_custom_call.1} parent=1 // pred_check_branch
      %52 = sbr.rel (0) target = $region33
    $region32: #{tpu_custom_call.1} parent=1 // pred_region
      %54 = dma.done [#allocation3], 2048
    $region33: #{tpu_custom_call.1} parent=1 // pred_fallthru
      _
    // Predicated region
    $region34: #{tpu_custom_call.1} parent=1 // pred_check
      _
    $region35: #{tpu_custom_call.1} parent=1 // pred_check_branch
      %56 = sbr.rel (0) target = $region37
    $region36: #{tpu_custom_call.1} parent=1 // pred_region
      %58 = dma.done [#allocation6], 512
    $region37: #{tpu_custom_call.1} parent=1 // pred_fallthru
      _
    %v59 = vld [vmem:[%s0] sm:$0xff]
    %v60 = vld [vmem:[%s0 + $0x8] sm:$0xff]
    %v61 = vld [vmem:[%s0 + $0x10] sm:$0xff]
    %v62 = vld [vmem:[%s0 + $0x18] sm:$0xff]
    %v63 = vld [vmem:[%s0 + $0x20] sm:$0xff]
    %v64 = vld [vmem:[%s0 + $0x28] sm:$0xff]
    %v65 = vld [vmem:[%s0 + $0x30] sm:$0xff]
    %v66 = vld [vmem:[%s0 + $0x38] sm:$0xff]
    %v67 = vld [vmem:[%s0 + $0x40] sm:$0xff]
    %v68 = vld [vmem:[%s0 + $0x48] sm:$0xff]
    %v69 = vld [vmem:[%s0 + $0x50] sm:$0xff]
    %v70 = vld [vmem:[%s0 + $0x58] sm:$0xff]
    %v71 = vld [vmem:[%s0 + $0x60] sm:$0xff]
    %v72 = vld [vmem:[%s0 + $0x68] sm:$0xff]
    %v73 = vld [vmem:[%s0 + $0x70] sm:$0xff]
    %v74 = vld [vmem:[%s0 + $0x78] sm:$0xff]
    %v75 = vld [vmem:[%s1] sm:$0xff]
    %v76 = vld [vmem:[%s1 + $0x8] sm:$0xff]
    %v77 = vld [vmem:[%s1 + $0x10] sm:$0xff]
    %v78 = vld [vmem:[%s1 + $0x18] sm:$0xff]
    %v79 = vld [vmem:[%s1 + $0x20] sm:$0xff]
    %v80 = vld [vmem:[%s1 + $0x28] sm:$0xff]
    %v81 = vld [vmem:[%s1 + $0x30] sm:$0xff]
    %v82 = vld [vmem:[%s1 + $0x38] sm:$0xff]
    %v83 = vld [vmem:[%s1 + $0x40] sm:$0xff]
    %v84 = vld [vmem:[%s1 + $0x48] sm:$0xff]
    %v85 = vld [vmem:[%s1 + $0x50] sm:$0xff]
    %v86 = vld [vmem:[%s1 + $0x58] sm:$0xff]
    %v87 = vld [vmem:[%s1 + $0x60] sm:$0xff]
    %v88 = vld [vmem:[%s1 + $0x68] sm:$0xff]
    %v89 = vld [vmem:[%s1 + $0x70] sm:$0xff]
    %v90 = vld [vmem:[%s1 + $0x78] sm:$0xff]
    %vm91 = vcmask 64512
    %v93 = vsel %vm91, %v59, 0
    %95 = vmatpush.msra.mxu0 0.0
    %96 = vmatpush.msra.mxu0 0.0
    %97 = vmatpush.msra.mxu0 0.0
    %98 = vmatpush.msra.mxu0 0.0
    %99 = vmatpush.msra.mxu0 0.0
    %100 = vmatpush.msra.mxu0 0.0
    %101 = vmatpush.msra.mxu0 0.0
    %102 = vmatpush.msra.mxu0 0.0
    %103 = vmatpush.msra.mxu0 0.0
    %104 = vmatpush.msra.mxu0 0.0
    %105 = vmatpush.msra.mxu0 0.0
    %106 = vmatpush.msra.mxu0 0.0
    %107 = vmatpush.msra.mxu0 0.0
    %108 = vmatpush.msra.mxu0 0.0
    %109 = vmatpush.msra.mxu0 0.0
    %110 = vmatpush.msra.mxu0 %v75
    %111 = vmatmul.f32.gmra.mxu0 %v93
    %v112 = vpop.f32.mrf.mxu0
    %v113 = vadd.f32 0.0, %v112
    %114 = vdwg.mxu0
    %v116 = vsel %vm91, %v60, 0
    %118 = vmatpush.msra.mxu0 0.0
    %119 = vmatpush.msra.mxu0 0.0
    %120 = vmatpush.msra.mxu0 0.0
    %121 = vmatpush.msra.mxu0 0.0
    %122 = vmatpush.msra.mxu0 0.0
    %123 = vmatpush.msra.mxu0 0.0
    %124 = vmatpush.msra.mxu0 0.0
    %125 = vmatpush.msra.mxu0 0.0
    %126 = vmatpush.msra.mxu0 0.0
    %127 = vmatpush.msra.mxu0 0.0
    %128 = vmatpush.msra.mxu0 0.0
    %129 = vmatpush.msra.mxu0 0.0
    %130 = vmatpush.msra.mxu0 0.0
    %131 = vmatpush.msra.mxu0 0.0
    %132 = vmatpush.msra.mxu0 0.0
    %133 = vmatpush.msra.mxu0 %v76
    %134 = vmatmul.f32.gmra.mxu0 %v116
    %v135 = vpop.f32.mrf.mxu0
    %v136 = vadd.f32 0.0, %v135
    %137 = vdwg.mxu0
    %v139 = vsel %vm91, %v61, 0
    %141 = vmatpush.msra.mxu0 0.0
    %142 = vmatpush.msra.mxu0 0.0
    %143 = vmatpush.msra.mxu0 0.0
    %144 = vmatpush.msra.mxu0 0.0
    %145 = vmatpush.msra.mxu0 0.0
    %146 = vmatpush.msra.mxu0 0.0
    %147 = vmatpush.msra.mxu0 0.0
    %148 = vmatpush.msra.mxu0 0.0
    %149 = vmatpush.msra.mxu0 0.0
    %150 = vmatpush.msra.mxu0 0.0
    %151 = vmatpush.msra.mxu0 0.0
    %152 = vmatpush.msra.mxu0 0.0
    %153 = vmatpush.msra.mxu0 0.0
    %154 = vmatpush.msra.mxu0 0.0
    %155 = vmatpush.msra.mxu0 0.0
    %156 = vmatpush.msra.mxu0 %v77
    %157 = vmatmul.f32.gmra.mxu0 %v139
    %v158 = vpop.f32.mrf.mxu0
    %v159 = vadd.f32 0.0, %v158
    %160 = vdwg.mxu0
    %v162 = vsel %vm91, %v62, 0
    %164 = vmatpush.msra.mxu0 0.0
    %165 = vmatpush.msra.mxu0 0.0
    %166 = vmatpush.msra.mxu0 0.0
    %167 = vmatpush.msra.mxu0 0.0
    %168 = vmatpush.msra.mxu0 0.0
    %169 = vmatpush.msra.mxu0 0.0
    %170 = vmatpush.msra.mxu0 0.0
    %171 = vmatpush.msra.mxu0 0.0
    %172 = vmatpush.msra.mxu0 0.0
    %173 = vmatpush.msra.mxu0 0.0
    %174 = vmatpush.msra.mxu0 0.0
    %175 = vmatpush.msra.mxu0 0.0
    %176 = vmatpush.msra.mxu0 0.0
    %177 = vmatpush.msra.mxu0 0.0
    %178 = vmatpush.msra.mxu0 0.0
    %179 = vmatpush.msra.mxu0 %v78
    %180 = vmatmul.f32.gmra.mxu0 %v162
    %v181 = vpop.f32.mrf.mxu0
    %v182 = vadd.f32 0.0, %v181
    %183 = vdwg.mxu0
    %v185 = vsel %vm91, %v63, 0
    %187 = vmatpush.msra.mxu0 0.0
    %188 = vmatpush.msra.mxu0 0.0
    %189 = vmatpush.msra.mxu0 0.0
    %190 = vmatpush.msra.mxu0 0.0
    %191 = vmatpush.msra.mxu0 0.0
    %192 = vmatpush.msra.mxu0 0.0
    %193 = vmatpush.msra.mxu0 0.0
    %194 = vmatpush.msra.mxu0 0.0
    %195 = vmatpush.msra.mxu0 0.0
    %196 = vmatpush.msra.mxu0 0.0
    %197 = vmatpush.msra.mxu0 0.0
    %198 = vmatpush.msra.mxu0 0.0
    %199 = vmatpush.msra.mxu0 0.0
    %200 = vmatpush.msra.mxu0 0.0
    %201 = vmatpush.msra.mxu0 0.0
    %202 = vmatpush.msra.mxu0 %v79
    %203 = vmatmul.f32.gmra.mxu0 %v185
    %v204 = vpop.f32.mrf.mxu0
    %v205 = vadd.f32 0.0, %v204
    %206 = vdwg.mxu0
    %v208 = vsel %vm91, %v64, 0
    %210 = vmatpush.msra.mxu0 0.0
    %211 = vmatpush.msra.mxu0 0.0
    %212 = vmatpush.msra.mxu0 0.0
    %213 = vmatpush.msra.mxu0 0.0
    %214 = vmatpush.msra.mxu0 0.0
    %215 = vmatpush.msra.mxu0 0.0
    %216 = vmatpush.msra.mxu0 0.0
    %217 = vmatpush.msra.mxu0 0.0
    %218 = vmatpush.msra.mxu0 0.0
    %219 = vmatpush.msra.mxu0 0.0
    %220 = vmatpush.msra.mxu0 0.0
    %221 = vmatpush.msra.mxu0 0.0
    %222 = vmatpush.msra.mxu0 0.0
    %223 = vmatpush.msra.mxu0 0.0
    %224 = vmatpush.msra.mxu0 0.0
    %225 = vmatpush.msra.mxu0 %v80
    %226 = vmatmul.f32.gmra.mxu0 %v208
    %v227 = vpop.f32.mrf.mxu0
    %v228 = vadd.f32 0.0, %v227
    %229 = vdwg.mxu0
    %v231 = vsel %vm91, %v65, 0
    %233 = vmatpush.msra.mxu0 0.0
    %234 = vmatpush.msra.mxu0 0.0
    %235 = vmatpush.msra.mxu0 0.0
    %236 = vmatpush.msra.mxu0 0.0
    %237 = vmatpush.msra.mxu0 0.0
    %238 = vmatpush.msra.mxu0 0.0
    %239 = vmatpush.msra.mxu0 0.0
    %240 = vmatpush.msra.mxu0 0.0
    %241 = vmatpush.msra.mxu0 0.0
    %242 = vmatpush.msra.mxu0 0.0
    %243 = vmatpush.msra.mxu0 0.0
    %244 = vmatpush.msra.mxu0 0.0
    %245 = vmatpush.msra.mxu0 0.0
    %246 = vmatpush.msra.mxu0 0.0
    %247 = vmatpush.msra.mxu0 0.0
    %248 = vmatpush.msra.mxu0 %v81
    %249 = vmatmul.f32.gmra.mxu0 %v231
    %v250 = vpop.f32.mrf.mxu0
    %v251 = vadd.f32 0.0, %v250
    %252 = vdwg.mxu0
    %v254 = vsel %vm91, %v66, 0
    %256 = vmatpush.msra.mxu0 0.0
    %257 = vmatpush.msra.mxu0 0.0
    %258 = vmatpush.msra.mxu0 0.0
    %259 = vmatpush.msra.mxu0 0.0
    %260 = vmatpush.msra.mxu0 0.0
    %261 = vmatpush.msra.mxu0 0.0
    %262 = vmatpush.msra.mxu0 0.0
    %263 = vmatpush.msra.mxu0 0.0
    %264 = vmatpush.msra.mxu0 0.0
    %265 = vmatpush.msra.mxu0 0.0
    %266 = vmatpush.msra.mxu0 0.0
    %267 = vmatpush.msra.mxu0 0.0
    %268 = vmatpush.msra.mxu0 0.0
    %269 = vmatpush.msra.mxu0 0.0
    %270 = vmatpush.msra.mxu0 0.0
    %271 = vmatpush.msra.mxu0 %v82
    %272 = vmatmul.f32.gmra.mxu0 %v254
    %v273 = vpop.f32.mrf.mxu0
    %v274 = vadd.f32 0.0, %v273
    %275 = vdwg.mxu0
    %v277 = vsel %vm91, %v67, 0
    %279 = vmatpush.msra.mxu0 0.0
    %280 = vmatpush.msra.mxu0 0.0
    %281 = vmatpush.msra.mxu0 0.0
    %282 = vmatpush.msra.mxu0 0.0
    %283 = vmatpush.msra.mxu0 0.0
    %284 = vmatpush.msra.mxu0 0.0
    %285 = vmatpush.msra.mxu0 0.0
    %286 = vmatpush.msra.mxu0 0.0
    %287 = vmatpush.msra.mxu0 0.0
    %288 = vmatpush.msra.mxu0 0.0
    %289 = vmatpush.msra.mxu0 0.0
    %290 = vmatpush.msra.mxu0 0.0
    %291 = vmatpush.msra.mxu0 0.0
    %292 = vmatpush.msra.mxu0 0.0
    %293 = vmatpush.msra.mxu0 0.0
    %294 = vmatpush.msra.mxu0 %v83
    %295 = vmatmul.f32.gmra.mxu0 %v277
    %v296 = vpop.f32.mrf.mxu0
    %v297 = vadd.f32 0.0, %v296
    %298 = vdwg.mxu0
    %v300 = vsel %vm91, %v68, 0
    %302 = vmatpush.msra.mxu0 0.0
    %303 = vmatpush.msra.mxu0 0.0
    %304 = vmatpush.msra.mxu0 0.0
    %305 = vmatpush.msra.mxu0 0.0
    %306 = vmatpush.msra.mxu0 0.0
    %307 = vmatpush.msra.mxu0 0.0
    %308 = vmatpush.msra.mxu0 0.0
    %309 = vmatpush.msra.mxu0 0.0
    %310 = vmatpush.msra.mxu0 0.0
    %311 = vmatpush.msra.mxu0 0.0
    %312 = vmatpush.msra.mxu0 0.0
    %313 = vmatpush.msra.mxu0 0.0
    %314 = vmatpush.msra.mxu0 0.0
    %315 = vmatpush.msra.mxu0 0.0
    %316 = vmatpush.msra.mxu0 0.0
    %317 = vmatpush.msra.mxu0 %v84
    %318 = vmatmul.f32.gmra.mxu0 %v300
    %v319 = vpop.f32.mrf.mxu0
    %v320 = vadd.f32 0.0, %v319
    %321 = vdwg.mxu0
    %v323 = vsel %vm91, %v69, 0
    %325 = vmatpush.msra.mxu0 0.0
    %326 = vmatpush.msra.mxu0 0.0
    %327 = vmatpush.msra.mxu0 0.0
    %328 = vmatpush.msra.mxu0 0.0
    %329 = vmatpush.msra.mxu0 0.0
    %330 = vmatpush.msra.mxu0 0.0
    %331 = vmatpush.msra.mxu0 0.0
    %332 = vmatpush.msra.mxu0 0.0
    %333 = vmatpush.msra.mxu0 0.0
    %334 = vmatpush.msra.mxu0 0.0
    %335 = vmatpush.msra.mxu0 0.0
    %336 = vmatpush.msra.mxu0 0.0
    %337 = vmatpush.msra.mxu0 0.0
    %338 = vmatpush.msra.mxu0 0.0
    %339 = vmatpush.msra.mxu0 0.0
    %340 = vmatpush.msra.mxu0 %v85
    %341 = vmatmul.f32.gmra.mxu0 %v323
    %v342 = vpop.f32.mrf.mxu0
    %v343 = vadd.f32 0.0, %v342
    %344 = vdwg.mxu0
    %v346 = vsel %vm91, %v70, 0
    %348 = vmatpush.msra.mxu0 0.0
    %349 = vmatpush.msra.mxu0 0.0
    %350 = vmatpush.msra.mxu0 0.0
    %351 = vmatpush.msra.mxu0 0.0
    %352 = vmatpush.msra.mxu0 0.0
    %353 = vmatpush.msra.mxu0 0.0
    %354 = vmatpush.msra.mxu0 0.0
    %355 = vmatpush.msra.mxu0 0.0
    %356 = vmatpush.msra.mxu0 0.0
    %357 = vmatpush.msra.mxu0 0.0
    %358 = vmatpush.msra.mxu0 0.0
    %359 = vmatpush.msra.mxu0 0.0
    %360 = vmatpush.msra.mxu0 0.0
    %361 = vmatpush.msra.mxu0 0.0
    %362 = vmatpush.msra.mxu0 0.0
    %363 = vmatpush.msra.mxu0 %v86
    %364 = vmatmul.f32.gmra.mxu0 %v346
    %v365 = vpop.f32.mrf.mxu0
    %v366 = vadd.f32 0.0, %v365
    %367 = vdwg.mxu0
    %v369 = vsel %vm91, %v71, 0
    %371 = vmatpush.msra.mxu0 0.0
    %372 = vmatpush.msra.mxu0 0.0
    %373 = vmatpush.msra.mxu0 0.0
    %374 = vmatpush.msra.mxu0 0.0
    %375 = vmatpush.msra.mxu0 0.0
    %376 = vmatpush.msra.mxu0 0.0
    %377 = vmatpush.msra.mxu0 0.0
    %378 = vmatpush.msra.mxu0 0.0
    %379 = vmatpush.msra.mxu0 0.0
    %380 = vmatpush.msra.mxu0 0.0
    %381 = vmatpush.msra.mxu0 0.0
    %382 = vmatpush.msra.mxu0 0.0
    %383 = vmatpush.msra.mxu0 0.0
    %384 = vmatpush.msra.mxu0 0.0
    %385 = vmatpush.msra.mxu0 0.0
    %386 = vmatpush.msra.mxu0 %v87
    %387 = vmatmul.f32.gmra.mxu0 %v369
    %v388 = vpop.f32.mrf.mxu0
    %v389 = vadd.f32 0.0, %v388
    %390 = vdwg.mxu0
    %v392 = vsel %vm91, %v72, 0
    %394 = vmatpush.msra.mxu0 0.0
    %395 = vmatpush.msra.mxu0 0.0
    %396 = vmatpush.msra.mxu0 0.0
    %397 = vmatpush.msra.mxu0 0.0
    %398 = vmatpush.msra.mxu0 0.0
    %399 = vmatpush.msra.mxu0 0.0
    %400 = vmatpush.msra.mxu0 0.0
    %401 = vmatpush.msra.mxu0 0.0
    %402 = vmatpush.msra.mxu0 0.0
    %403 = vmatpush.msra.mxu0 0.0
    %404 = vmatpush.msra.mxu0 0.0
    %405 = vmatpush.msra.mxu0 0.0
    %406 = vmatpush.msra.mxu0 0.0
    %407 = vmatpush.msra.mxu0 0.0
    %408 = vmatpush.msra.mxu0 0.0
    %409 = vmatpush.msra.mxu0 %v88
    %410 = vmatmul.f32.gmra.mxu0 %v392
    %v411 = vpop.f32.mrf.mxu0
    %v412 = vadd.f32 0.0, %v411
    %413 = vdwg.mxu0
    %v415 = vsel %vm91, %v73, 0
    %417 = vmatpush.msra.mxu0 0.0
    %418 = vmatpush.msra.mxu0 0.0
    %419 = vmatpush.msra.mxu0 0.0
    %420 = vmatpush.msra.mxu0 0.0
    %421 = vmatpush.msra.mxu0 0.0
    %422 = vmatpush.msra.mxu0 0.0
    %423 = vmatpush.msra.mxu0 0.0
    %424 = vmatpush.msra.mxu0 0.0
    %425 = vmatpush.msra.mxu0 0.0
    %426 = vmatpush.msra.mxu0 0.0
    %427 = vmatpush.msra.mxu0 0.0
    %428 = vmatpush.msra.mxu0 0.0
    %429 = vmatpush.msra.mxu0 0.0
    %430 = vmatpush.msra.mxu0 0.0
    %431 = vmatpush.msra.mxu0 0.0
    %432 = vmatpush.msra.mxu0 %v89
    %433 = vmatmul.f32.gmra.mxu0 %v415
    %v434 = vpop.f32.mrf.mxu0
    %v435 = vadd.f32 0.0, %v434
    %436 = vdwg.mxu0
    %v438 = vsel %vm91, %v74, 0
    %440 = vmatpush.msra.mxu0 0.0
    %441 = vmatpush.msra.mxu0 0.0
    %442 = vmatpush.msra.mxu0 0.0
    %443 = vmatpush.msra.mxu0 0.0
    %444 = vmatpush.msra.mxu0 0.0
    %445 = vmatpush.msra.mxu0 0.0
    %446 = vmatpush.msra.mxu0 0.0
    %447 = vmatpush.msra.mxu0 0.0
    %448 = vmatpush.msra.mxu0 0.0
    %449 = vmatpush.msra.mxu0 0.0
    %450 = vmatpush.msra.mxu0 0.0
    %451 = vmatpush.msra.mxu0 0.0
    %452 = vmatpush.msra.mxu0 0.0
    %453 = vmatpush.msra.mxu0 0.0
    %454 = vmatpush.msra.mxu0 0.0
    %455 = vmatpush.msra.mxu0 %v90
    %456 = vmatmul.f32.gmra.mxu0 %v438
    %v457 = vpop.f32.mrf.mxu0
    %v458 = vadd.f32 0.0, %v457
    %459 = vdwg.mxu0
    %v460 = vld [vmem:[#allocation2] sm:$0xff]
    %v461 = vld [vmem:[#allocation2 + $0x8] sm:$0xff]
    %v462 = vld [vmem:[#allocation2 + $0x10] sm:$0xff]
    %v463 = vld [vmem:[#allocation2 + $0x18] sm:$0xff]
    %v464 = vld [vmem:[#allocation2 + $0x20] sm:$0xff]
    %v465 = vld [vmem:[#allocation2 + $0x28] sm:$0xff]
    %v466 = vld [vmem:[#allocation2 + $0x30] sm:$0xff]
    %v467 = vld [vmem:[#allocation2 + $0x38] sm:$0xff]
    %v468 = vld [vmem:[#allocation2 + $0x40] sm:$0xff]
    %v469 = vld [vmem:[#allocation2 + $0x48] sm:$0xff]
    %v470 = vld [vmem:[#allocation2 + $0x50] sm:$0xff]
    %v471 = vld [vmem:[#allocation2 + $0x58] sm:$0xff]
    %v472 = vld [vmem:[#allocation2 + $0x60] sm:$0xff]
    %v473 = vld [vmem:[#allocation2 + $0x68] sm:$0xff]
    %v474 = vld [vmem:[#allocation2 + $0x70] sm:$0xff]
    %v475 = vld [vmem:[#allocation2 + $0x78] sm:$0xff]
    %v476 = vld [vmem:[%s3] sm:$0xff]
    %v477 = vld [vmem:[%s3 + $0x8] sm:$0xff]
    %v478 = vld [vmem:[%s3 + $0x10] sm:$0xff]
    %v479 = vld [vmem:[%s3 + $0x18] sm:$0xff]
    %v480 = vld [vmem:[%s4] sm:$0x1]
    %v482 = vperm.slane %v480, 0
    %vm484 = vcmask 261120
    %v486 = vsel %vm484, %v113, 0
    %v489 = vsel %vm484, %v136, 0
    %v492 = vsel %vm484, %v159, 0
    %v495 = vsel %vm484, %v182, 0
    %v498 = vsel %vm484, %v205, 0
    %v501 = vsel %vm484, %v228, 0
    %v504 = vsel %vm484, %v251, 0
    %v507 = vsel %vm484, %v274, 0
    %v510 = vsel %vm484, %v297, 0
    %v513 = vsel %vm484, %v320, 0
    %v516 = vsel %vm484, %v343, 0
    %v519 = vsel %vm484, %v366, 0
    %v522 = vsel %vm484, %v389, 0
    %v525 = vsel %vm484, %v412, 0
    %v528 = vsel %vm484, %v435, 0
    %v531 = vsel %vm484, %v458, 0
    %533 = vmatpush.msra.mxu0 0.0
    %534 = vmatpush.msra.mxu0 0.0
    %535 = vmatpush.msra.mxu0 0.0
    %536 = vmatpush.msra.mxu0 0.0
    %537 = vmatpush.msra.mxu0 0.0
    %538 = vmatpush.msra.mxu0 0.0
    %539 = vmatpush.msra.mxu0 0.0
    %540 = vmatpush.msra.mxu0 0.0
    %541 = vmatpush.msra.mxu0 0.0
    %542 = vmatpush.msra.mxu0 0.0
    %543 = vmatpush.msra.mxu0 0.0
    %544 = vmatpush.msra.mxu0 0.0
    %545 = vmatpush.msra.mxu0 %v479
    %546 = vmatpush.msra.mxu0 %v478
    %547 = vmatpush.msra.mxu0 %v477
    %548 = vmatpush.msra.mxu0 %v476
    %549 = vmatmul.f32.gmra.mxu0 %v486
    %v550 = vpop.f32.mrf.mxu0
    %v551 = vadd.f32 %v482, %v550
    %552 = vmatmul.f32.gmra.mxu0 %v489
    %v553 = vpop.f32.mrf.mxu0
    %v554 = vadd.f32 %v482, %v553
    %555 = vmatmul.f32.gmra.mxu0 %v492
    %v556 = vpop.f32.mrf.mxu0
    %v557 = vadd.f32 %v482, %v556
    %558 = vmatmul.f32.gmra.mxu0 %v495
    %v559 = vpop.f32.mrf.mxu0
    %v560 = vadd.f32 %v482, %v559
    %561 = vmatmul.f32.gmra.mxu0 %v498
    %v562 = vpop.f32.mrf.mxu0
    %v563 = vadd.f32 %v482, %v562
    %564 = vmatmul.f32.gmra.mxu0 %v501
    %v565 = vpop.f32.mrf.mxu0
    %v566 = vadd.f32 %v482, %v565
    %567 = vmatmul.f32.gmra.mxu0 %v504
    %v568 = vpop.f32.mrf.mxu0
    %v569 = vadd.f32 %v482, %v568
    %570 = vmatmul.f32.gmra.mxu0 %v507
    %v571 = vpop.f32.mrf.mxu0
    %v572 = vadd.f32 %v482, %v571
    %573 = vmatmul.f32.gmra.mxu0 %v510
    %v574 = vpop.f32.mrf.mxu0
    %v575 = vadd.f32 %v482, %v574
    %576 = vmatmul.f32.gmra.mxu0 %v513
    %v577 = vpop.f32.mrf.mxu0
    %v578 = vadd.f32 %v482, %v577
    %579 = vmatmul.f32.gmra.mxu0 %v516
    %v580 = vpop.f32.mrf.mxu0
    %v581 = vadd.f32 %v482, %v580
    %582 = vmatmul.f32.gmra.mxu0 %v519
    %v583 = vpop.f32.mrf.mxu0
    %v584 = vadd.f32 %v482, %v583
    %585 = vmatmul.f32.gmra.mxu0 %v522
    %v586 = vpop.f32.mrf.mxu0
    %v587 = vadd.f32 %v482, %v586
    %588 = vmatmul.f32.gmra.mxu0 %v525
    %v589 = vpop.f32.mrf.mxu0
    %v590 = vadd.f32 %v482, %v589
    %591 = vmatmul.f32.gmra.mxu0 %v528
    %v592 = vpop.f32.mrf.mxu0
    %v593 = vadd.f32 %v482, %v592
    %594 = vmatmul.f32.gmra.mxu0 %v531
    %v595 = vpop.f32.mrf.mxu0
    %v596 = vadd.f32 %v482, %v595
    %597 = vdwg.mxu0
    %v598 = vld [vmem:[%s5] sm:$0xff]
    %v599 = vld [vmem:[%s5 + $0x8] sm:$0xff]
    %v600 = vld [vmem:[%s5 + $0x10] sm:$0xff]
    %v601 = vld [vmem:[%s5 + $0x18] sm:$0xff]
    %v603 = vsel %vm484, %v460, 0
    %v606 = vsel %vm484, %v461, 0
    %v609 = vsel %vm484, %v462, 0
    %v612 = vsel %vm484, %v463, 0
    %v615 = vsel %vm484, %v464, 0
    %v618 = vsel %vm484, %v465, 0
    %v621 = vsel %vm484, %v466, 0
    %v624 = vsel %vm484, %v467, 0
    %v627 = vsel %vm484, %v468, 0
    %v630 = vsel %vm484, %v469, 0
    %v633 = vsel %vm484, %v470, 0
    %v636 = vsel %vm484, %v471, 0
    %v639 = vsel %vm484, %v472, 0
    %v642 = vsel %vm484, %v473, 0
    %v645 = vsel %vm484, %v474, 0
    %v648 = vsel %vm484, %v475, 0
    %650 = vmatpush.msra.mxu0 0.0
    %651 = vmatpush.msra.mxu0 0.0
    %652 = vmatpush.msra.mxu0 0.0
    %653 = vmatpush.msra.mxu0 0.0
    %654 = vmatpush.msra.mxu0 0.0
    %655 = vmatpush.msra.mxu0 0.0
    %656 = vmatpush.msra.mxu0 0.0
    %657 = vmatpush.msra.mxu0 0.0
    %658 = vmatpush.msra.mxu0 0.0
    %659 = vmatpush.msra.mxu0 0.0
    %660 = vmatpush.msra.mxu0 0.0
    %661 = vmatpush.msra.mxu0 0.0
    %662 = vmatpush.msra.mxu0 %v601
    %663 = vmatpush.msra.mxu0 %v600
    %664 = vmatpush.msra.mxu0 %v599
    %665 = vmatpush.msra.mxu0 %v598
    %666 = vmatmul.f32.gmra.mxu0 %v603
    %v667 = vpop.f32.mrf.mxu0
    %v668 = vadd.f32 0.0, %v667
    %669 = vmatmul.f32.gmra.mxu0 %v606
    %v670 = vpop.f32.mrf.mxu0
    %v671 = vadd.f32 0.0, %v670
    %672 = vmatmul.f32.gmra.mxu0 %v609
    %v673 = vpop.f32.mrf.mxu0
    %v674 = vadd.f32 0.0, %v673
    %675 = vmatmul.f32.gmra.mxu0 %v612
    %v676 = vpop.f32.mrf.mxu0
    %v677 = vadd.f32 0.0, %v676
    %678 = vmatmul.f32.gmra.mxu0 %v615
    %v679 = vpop.f32.mrf.mxu0
    %v680 = vadd.f32 0.0, %v679
    %681 = vmatmul.f32.gmra.mxu0 %v618
    %v682 = vpop.f32.mrf.mxu0
    %v683 = vadd.f32 0.0, %v682
    %684 = vmatmul.f32.gmra.mxu0 %v621
    %v685 = vpop.f32.mrf.mxu0
    %v686 = vadd.f32 0.0, %v685
    %687 = vmatmul.f32.gmra.mxu0 %v624
    %v688 = vpop.f32.mrf.mxu0
    %v689 = vadd.f32 0.0, %v688
    %690 = vmatmul.f32.gmra.mxu0 %v627
    %v691 = vpop.f32.mrf.mxu0
    %v692 = vadd.f32 0.0, %v691
    %693 = vmatmul.f32.gmra.mxu0 %v630
    %v694 = vpop.f32.mrf.mxu0
    %v695 = vadd.f32 0.0, %v694
    %696 = vmatmul.f32.gmra.mxu0 %v633
    %v697 = vpop.f32.mrf.mxu0
    %v698 = vadd.f32 0.0, %v697
    %699 = vmatmul.f32.gmra.mxu0 %v636
    %v700 = vpop.f32.mrf.mxu0
    %v701 = vadd.f32 0.0, %v700
    %702 = vmatmul.f32.gmra.mxu0 %v639
    %v703 = vpop.f32.mrf.mxu0
    %v704 = vadd.f32 0.0, %v703
    %705 = vmatmul.f32.gmra.mxu0 %v642
    %v706 = vpop.f32.mrf.mxu0
    %v707 = vadd.f32 0.0, %v706
    %708 = vmatmul.f32.gmra.mxu0 %v645
    %v709 = vpop.f32.mrf.mxu0
    %v710 = vadd.f32 0.0, %v709
    %711 = vmatmul.f32.gmra.mxu0 %v648
    %v712 = vpop.f32.mrf.mxu0
    %v713 = vadd.f32 0.0, %v712
    %714 = vdwg.mxu0
    %v715 = vadd.f32 %v551, %v668
    %v716 = vadd.f32 %v554, %v671
    %v717 = vadd.f32 %v557, %v674
    %v718 = vadd.f32 %v560, %v677
    %v719 = vadd.f32 %v563, %v680
    %v720 = vadd.f32 %v566, %v683
    %v721 = vadd.f32 %v569, %v686
    %v722 = vadd.f32 %v572, %v689
    %v723 = vadd.f32 %v575, %v692
    %v724 = vadd.f32 %v578, %v695
    %v725 = vadd.f32 %v581, %v698
    %v726 = vadd.f32 %v584, %v701
    %v727 = vadd.f32 %v587, %v704
    %v728 = vadd.f32 %v590, %v707
    %v729 = vadd.f32 %v593, %v710
    %v730 = vadd.f32 %v596, %v713
    %v731 = vxor.u32 %v715, 2147483648
    %v732 = vxor.u32 %v716, 2147483648
    %v733 = vxor.u32 %v717, 2147483648
    %v734 = vxor.u32 %v718, 2147483648
    %v735 = vxor.u32 %v719, 2147483648
    %v736 = vxor.u32 %v720, 2147483648
    %v737 = vxor.u32 %v721, 2147483648
    %v738 = vxor.u32 %v722, 2147483648
    %v739 = vxor.u32 %v723, 2147483648
    %v740 = vxor.u32 %v724, 2147483648
    %v741 = vxor.u32 %v725, 2147483648
    %v742 = vxor.u32 %v726, 2147483648
    %v743 = vxor.u32 %v727, 2147483648
    %v744 = vxor.u32 %v728, 2147483648
    %v745 = vxor.u32 %v729, 2147483648
    %v746 = vxor.u32 %v730, 2147483648
    %v747 = vmul.f32 %v731, 1.442695
    %v748 = vpow.pop %v747
    %v749 = vmul.f32 %v732, 1.442695
    %v750 = vpow.pop %v749
    %v751 = vmul.f32 %v733, 1.442695
    %v752 = vpow.pop %v751
    %v753 = vmul.f32 %v734, 1.442695
    %v754 = vpow.pop %v753
    %v755 = vmul.f32 %v735, 1.442695
    %v756 = vpow.pop %v755
    %v757 = vmul.f32 %v736, 1.442695
    %v758 = vpow.pop %v757
    %v759 = vmul.f32 %v737, 1.442695
    %v760 = vpow.pop %v759
    %v761 = vmul.f32 %v738, 1.442695
    %v762 = vpow.pop %v761
    %v763 = vmul.f32 %v739, 1.442695
    %v764 = vpow.pop %v763
    %v765 = vmul.f32 %v740, 1.442695
    %v766 = vpow.pop %v765
    %v767 = vmul.f32 %v741, 1.442695
    %v768 = vpow.pop %v767
    %v769 = vmul.f32 %v742, 1.442695
    %v770 = vpow.pop %v769
    %v771 = vmul.f32 %v743, 1.442695
    %v772 = vpow.pop %v771
    %v773 = vmul.f32 %v744, 1.442695
    %v774 = vpow.pop %v773
    %v775 = vmul.f32 %v745, 1.442695
    %v776 = vpow.pop %v775
    %v777 = vmul.f32 %v746, 1.442695
    %v778 = vpow.pop %v777
    %v779 = vadd.f32 %v748, 1.0
    %v780 = vadd.f32 %v750, 1.0
    %v781 = vadd.f32 %v752, 1.0
    %v782 = vadd.f32 %v754, 1.0
    %v783 = vadd.f32 %v756, 1.0
    %v784 = vadd.f32 %v758, 1.0
    %v785 = vadd.f32 %v760, 1.0
    %v786 = vadd.f32 %v762, 1.0
    %v787 = vadd.f32 %v764, 1.0
    %v788 = vadd.f32 %v766, 1.0
    %v789 = vadd.f32 %v768, 1.0
    %v790 = vadd.f32 %v770, 1.0
    %v791 = vadd.f32 %v772, 1.0
    %v792 = vadd.f32 %v774, 1.0
    %v793 = vadd.f32 %v776, 1.0
    %v794 = vadd.f32 %v778, 1.0
    %v795 = vrcp.pop %v779
    %v796 = vmul.f32 %v779, %v795
    %v797 = vsub.f32 1.0, %v796
    %v798 = vmul.f32 %v795, %v797
    %v799 = vadd.f32 %v795, %v798
    %vm800 = vweird.f32 %v779
    %vm801 = vweird.f32 %v795
    %vm802 = vmor %vm800, %vm801
    %v803 = vsel %vm802, %v795, %v799
    %v804 = vand.u32 2147483647, %v779
    %vm805 = vcmp.eq.f32.partialorder %v804, 8.507059e+37
    %v806 = vand.u32 %v779, 2147483648
    %v807 = vor.u32 1.1754944e-38, %v806
    %v808 = vsel %vm805, %v807, %v803
    %v809 = vmul.f32 1.0, %v808
    %v810 = vrcp.pop %v780
    %v811 = vmul.f32 %v780, %v810
    %v812 = vsub.f32 1.0, %v811
    %v813 = vmul.f32 %v810, %v812
    %v814 = vadd.f32 %v810, %v813
    %vm815 = vweird.f32 %v780
    %vm816 = vweird.f32 %v810
    %vm817 = vmor %vm815, %vm816
    %v818 = vsel %vm817, %v810, %v814
    %v819 = vand.u32 2147483647, %v780
    %vm820 = vcmp.eq.f32.partialorder %v819, 8.507059e+37
    %v821 = vand.u32 %v780, 2147483648
    %v822 = vor.u32 1.1754944e-38, %v821
    %v823 = vsel %vm820, %v822, %v818
    %v824 = vmul.f32 1.0, %v823
    %v825 = vrcp.pop %v781
    %v826 = vmul.f32 %v781, %v825
    %v827 = vsub.f32 1.0, %v826
    %v828 = vmul.f32 %v825, %v827
    %v829 = vadd.f32 %v825, %v828
    %vm830 = vweird.f32 %v781
    %vm831 = vweird.f32 %v825
    %vm832 = vmor %vm830, %vm831
    %v833 = vsel %vm832, %v825, %v829
    %v834 = vand.u32 2147483647, %v781
    %vm835 = vcmp.eq.f32.partialorder %v834, 8.507059e+37
    %v836 = vand.u32 %v781, 2147483648
    %v837 = vor.u32 1.1754944e-38, %v836
    %v838 = vsel %vm835, %v837, %v833
    %v839 = vmul.f32 1.0, %v838
    %v840 = vrcp.pop %v782
    %v841 = vmul.f32 %v782, %v840
    %v842 = vsub.f32 1.0, %v841
    %v843 = vmul.f32 %v840, %v842
    %v844 = vadd.f32 %v840, %v843
    %vm845 = vweird.f32 %v782
    %vm846 = vweird.f32 %v840
    %vm847 = vmor %vm845, %vm846
    %v848 = vsel %vm847, %v840, %v844
    %v849 = vand.u32 2147483647, %v782
    %vm850 = vcmp.eq.f32.partialorder %v849, 8.507059e+37
    %v851 = vand.u32 %v782, 2147483648
    %v852 = vor.u32 1.1754944e-38, %v851
    %v853 = vsel %vm850, %v852, %v848
    %v854 = vmul.f32 1.0, %v853
    %v855 = vrcp.pop %v783
    %v856 = vmul.f32 %v783, %v855
    %v857 = vsub.f32 1.0, %v856
    %v858 = vmul.f32 %v855, %v857
    %v859 = vadd.f32 %v855, %v858
    %vm860 = vweird.f32 %v783
    %vm861 = vweird.f32 %v855
    %vm862 = vmor %vm860, %vm861
    %v863 = vsel %vm862, %v855, %v859
    %v864 = vand.u32 2147483647, %v783
    %vm865 = vcmp.eq.f32.partialorder %v864, 8.507059e+37
    %v866 = vand.u32 %v783, 2147483648
    %v867 = vor.u32 1.1754944e-38, %v866
    %v868 = vsel %vm865, %v867, %v863
    %v869 = vmul.f32 1.0, %v868
    %v870 = vrcp.pop %v784
    %v871 = vmul.f32 %v784, %v870
    %v872 = vsub.f32 1.0, %v871
    %v873 = vmul.f32 %v870, %v872
    %v874 = vadd.f32 %v870, %v873
    %vm875 = vweird.f32 %v784
    %vm876 = vweird.f32 %v870
    %vm877 = vmor %vm875, %vm876
    %v878 = vsel %vm877, %v870, %v874
    %v879 = vand.u32 2147483647, %v784
    %vm880 = vcmp.eq.f32.partialorder %v879, 8.507059e+37
    %v881 = vand.u32 %v784, 2147483648
    %v882 = vor.u32 1.1754944e-38, %v881
    %v883 = vsel %vm880, %v882, %v878
    %v884 = vmul.f32 1.0, %v883
    %v885 = vrcp.pop %v785
    %v886 = vmul.f32 %v785, %v885
    %v887 = vsub.f32 1.0, %v886
    %v888 = vmul.f32 %v885, %v887
    %v889 = vadd.f32 %v885, %v888
    %vm890 = vweird.f32 %v785
    %vm891 = vweird.f32 %v885
    %vm892 = vmor %vm890, %vm891
    %v893 = vsel %vm892, %v885, %v889
    %v894 = vand.u32 2147483647, %v785
    %vm895 = vcmp.eq.f32.partialorder %v894, 8.507059e+37
    %v896 = vand.u32 %v785, 2147483648
    %v897 = vor.u32 1.1754944e-38, %v896
    %v898 = vsel %vm895, %v897, %v893
    %v899 = vmul.f32 1.0, %v898
    %v900 = vrcp.pop %v786
    %v901 = vmul.f32 %v786, %v900
    %v902 = vsub.f32 1.0, %v901
    %v903 = vmul.f32 %v900, %v902
    %v904 = vadd.f32 %v900, %v903
    %vm905 = vweird.f32 %v786
    %vm906 = vweird.f32 %v900
    %vm907 = vmor %vm905, %vm906
    %v908 = vsel %vm907, %v900, %v904
    %v909 = vand.u32 2147483647, %v786
    %vm910 = vcmp.eq.f32.partialorder %v909, 8.507059e+37
    %v911 = vand.u32 %v786, 2147483648
    %v912 = vor.u32 1.1754944e-38, %v911
    %v913 = vsel %vm910, %v912, %v908
    %v914 = vmul.f32 1.0, %v913
    %v915 = vrcp.pop %v787
    %v916 = vmul.f32 %v787, %v915
    %v917 = vsub.f32 1.0, %v916
    %v918 = vmul.f32 %v915, %v917
    %v919 = vadd.f32 %v915, %v918
    %vm920 = vweird.f32 %v787
    %vm921 = vweird.f32 %v915
    %vm922 = vmor %vm920, %vm921
    %v923 = vsel %vm922, %v915, %v919
    %v924 = vand.u32 2147483647, %v787
    %vm925 = vcmp.eq.f32.partialorder %v924, 8.507059e+37
    %v926 = vand.u32 %v787, 2147483648
    %v927 = vor.u32 1.1754944e-38, %v926
    %v928 = vsel %vm925, %v927, %v923
    %v929 = vmul.f32 1.0, %v928
    %v930 = vrcp.pop %v788
    %v931 = vmul.f32 %v788, %v930
    %v932 = vsub.f32 1.0, %v931
    %v933 = vmul.f32 %v930, %v932
    %v934 = vadd.f32 %v930, %v933
    %vm935 = vweird.f32 %v788
    %vm936 = vweird.f32 %v930
    %vm937 = vmor %vm935, %vm936
    %v938 = vsel %vm937, %v930, %v934
    %v939 = vand.u32 2147483647, %v788
    %vm940 = vcmp.eq.f32.partialorder %v939, 8.507059e+37
    %v941 = vand.u32 %v788, 2147483648
    %v942 = vor.u32 1.1754944e-38, %v941
    %v943 = vsel %vm940, %v942, %v938
    %v944 = vmul.f32 1.0, %v943
    %v945 = vrcp.pop %v789
    %v946 = vmul.f32 %v789, %v945
    %v947 = vsub.f32 1.0, %v946
    %v948 = vmul.f32 %v945, %v947
    %v949 = vadd.f32 %v945, %v948
    %vm950 = vweird.f32 %v789
    %vm951 = vweird.f32 %v945
    %vm952 = vmor %vm950, %vm951
    %v953 = vsel %vm952, %v945, %v949
    %v954 = vand.u32 2147483647, %v789
    %vm955 = vcmp.eq.f32.partialorder %v954, 8.507059e+37
    %v956 = vand.u32 %v789, 2147483648
    %v957 = vor.u32 1.1754944e-38, %v956
    %v958 = vsel %vm955, %v957, %v953
    %v959 = vmul.f32 1.0, %v958
    %v960 = vrcp.pop %v790
    %v961 = vmul.f32 %v790, %v960
    %v962 = vsub.f32 1.0, %v961
    %v963 = vmul.f32 %v960, %v962
    %v964 = vadd.f32 %v960, %v963
    %vm965 = vweird.f32 %v790
    %vm966 = vweird.f32 %v960
    %vm967 = vmor %vm965, %vm966
    %v968 = vsel %vm967, %v960, %v964
    %v969 = vand.u32 2147483647, %v790
    %vm970 = vcmp.eq.f32.partialorder %v969, 8.507059e+37
    %v971 = vand.u32 %v790, 2147483648
    %v972 = vor.u32 1.1754944e-38, %v971
    %v973 = vsel %vm970, %v972, %v968
    %v974 = vmul.f32 1.0, %v973
    %v975 = vrcp.pop %v791
    %v976 = vmul.f32 %v791, %v975
    %v977 = vsub.f32 1.0, %v976
    %v978 = vmul.f32 %v975, %v977
    %v979 = vadd.f32 %v975, %v978
    %vm980 = vweird.f32 %v791
    %vm981 = vweird.f32 %v975
    %vm982 = vmor %vm980, %vm981
    %v983 = vsel %vm982, %v975, %v979
    %v984 = vand.u32 2147483647, %v791
    %vm985 = vcmp.eq.f32.partialorder %v984, 8.507059e+37
    %v986 = vand.u32 %v791, 2147483648
    %v987 = vor.u32 1.1754944e-38, %v986
    %v988 = vsel %vm985, %v987, %v983
    %v989 = vmul.f32 1.0, %v988
    %v990 = vrcp.pop %v792
    %v991 = vmul.f32 %v792, %v990
    %v992 = vsub.f32 1.0, %v991
    %v993 = vmul.f32 %v990, %v992
    %v994 = vadd.f32 %v990, %v993
    %vm995 = vweird.f32 %v792
    %vm996 = vweird.f32 %v990
    %vm997 = vmor %vm995, %vm996
    %v998 = vsel %vm997, %v990, %v994
    %v999 = vand.u32 2147483647, %v792
    %vm1000 = vcmp.eq.f32.partialorder %v999, 8.507059e+37
    %v1001 = vand.u32 %v792, 2147483648
    %v1002 = vor.u32 1.1754944e-38, %v1001
    %v1003 = vsel %vm1000, %v1002, %v998
    %v1004 = vmul.f32 1.0, %v1003
    %v1005 = vrcp.pop %v793
    %v1006 = vmul.f32 %v793, %v1005
    %v1007 = vsub.f32 1.0, %v1006
    %v1008 = vmul.f32 %v1005, %v1007
    %v1009 = vadd.f32 %v1005, %v1008
    %vm1010 = vweird.f32 %v793
    %vm1011 = vweird.f32 %v1005
    %vm1012 = vmor %vm1010, %vm1011
    %v1013 = vsel %vm1012, %v1005, %v1009
    %v1014 = vand.u32 2147483647, %v793
    %vm1015 = vcmp.eq.f32.partialorder %v1014, 8.507059e+37
    %v1016 = vand.u32 %v793, 2147483648
    %v1017 = vor.u32 1.1754944e-38, %v1016
    %v1018 = vsel %vm1015, %v1017, %v1013
    %v1019 = vmul.f32 1.0, %v1018
    %v1020 = vrcp.pop %v794
    %v1021 = vmul.f32 %v794, %v1020
    %v1022 = vsub.f32 1.0, %v1021
    %v1023 = vmul.f32 %v1020, %v1022
    %v1024 = vadd.f32 %v1020, %v1023
    %vm1025 = vweird.f32 %v794
    %vm1026 = vweird.f32 %v1020
    %vm1027 = vmor %vm1025, %vm1026
    %v1028 = vsel %vm1027, %v1020, %v1024
    %v1029 = vand.u32 2147483647, %v794
    %vm1030 = vcmp.eq.f32.partialorder %v1029, 8.507059e+37
    %v1031 = vand.u32 %v794, 2147483648
    %v1032 = vor.u32 1.1754944e-38, %v1031
    %v1033 = vsel %vm1030, %v1032, %v1028
    %v1034 = vmul.f32 1.0, %v1033
    %v1035 = vmul.f32 %v809, %v460
    %v1036 = vmul.f32 %v824, %v461
    %v1037 = vmul.f32 %v839, %v462
    %v1038 = vmul.f32 %v854, %v463
    %v1039 = vmul.f32 %v869, %v464
    %v1040 = vmul.f32 %v884, %v465
    %v1041 = vmul.f32 %v899, %v466
    %v1042 = vmul.f32 %v914, %v467
    %v1043 = vmul.f32 %v929, %v468
    %v1044 = vmul.f32 %v944, %v469
    %v1045 = vmul.f32 %v959, %v470
    %v1046 = vmul.f32 %v974, %v471
    %v1047 = vmul.f32 %v989, %v472
    %v1048 = vmul.f32 %v1004, %v473
    %v1049 = vmul.f32 %v1019, %v474
    %v1050 = vmul.f32 %v1034, %v475
    %v1051 = vld [vmem:[#allocation5] sm:$0xff]
    %v1052 = vld [vmem:[#allocation5 + $0x8] sm:$0xff]
    %v1053 = vld [vmem:[#allocation5 + $0x10] sm:$0xff]
    %v1054 = vld [vmem:[#allocation5 + $0x18] sm:$0xff]
    %v1056 = vsel %vm484, %v1035, 0
    %v1059 = vsel %vm484, %v1036, 0
    %v1062 = vsel %vm484, %v1037, 0
    %v1065 = vsel %vm484, %v1038, 0
    %v1068 = vsel %vm484, %v1039, 0
    %v1071 = vsel %vm484, %v1040, 0
    %v1074 = vsel %vm484, %v1041, 0
    %v1077 = vsel %vm484, %v1042, 0
    %v1080 = vsel %vm484, %v1043, 0
    %v1083 = vsel %vm484, %v1044, 0
    %v1086 = vsel %vm484, %v1045, 0
    %v1089 = vsel %vm484, %v1046, 0
    %v1092 = vsel %vm484, %v1047, 0
    %v1095 = vsel %vm484, %v1048, 0
    %v1098 = vsel %vm484, %v1049, 0
    %v1101 = vsel %vm484, %v1050, 0
    %1103 = vmatpush.msra.mxu0 0.0
    %1104 = vmatpush.msra.mxu0 0.0
    %1105 = vmatpush.msra.mxu0 0.0
    %1106 = vmatpush.msra.mxu0 0.0
    %1107 = vmatpush.msra.mxu0 0.0
    %1108 = vmatpush.msra.mxu0 0.0
    %1109 = vmatpush.msra.mxu0 0.0
    %1110 = vmatpush.msra.mxu0 0.0
    %1111 = vmatpush.msra.mxu0 0.0
    %1112 = vmatpush.msra.mxu0 0.0
    %1113 = vmatpush.msra.mxu0 0.0
    %1114 = vmatpush.msra.mxu0 0.0
    %1115 = vmatpush.msra.mxu0 %v1054
    %1116 = vmatpush.msra.mxu0 %v1053
    %1117 = vmatpush.msra.mxu0 %v1052
    %1118 = vmatpush.msra.mxu0 %v1051
    %1119 = vmatmul.f32.gmra.mxu0 %v1056
    %v1120 = vpop.f32.mrf.mxu0
    %v1121 = vadd.f32 0.0, %v1120
    %1122 = vmatmul.f32.gmra.mxu0 %v1059
    %v1123 = vpop.f32.mrf.mxu0
    %v1124 = vadd.f32 0.0, %v1123
    %1125 = vmatmul.f32.gmra.mxu0 %v1062
    %v1126 = vpop.f32.mrf.mxu0
    %v1127 = vadd.f32 0.0, %v1126
    %1128 = vmatmul.f32.gmra.mxu0 %v1065
    %v1129 = vpop.f32.mrf.mxu0
    %v1130 = vadd.f32 0.0, %v1129
    %1131 = vmatmul.f32.gmra.mxu0 %v1068
    %v1132 = vpop.f32.mrf.mxu0
    %v1133 = vadd.f32 0.0, %v1132
    %1134 = vmatmul.f32.gmra.mxu0 %v1071
    %v1135 = vpop.f32.mrf.mxu0
    %v1136 = vadd.f32 0.0, %v1135
    %1137 = vmatmul.f32.gmra.mxu0 %v1074
    %v1138 = vpop.f32.mrf.mxu0
    %v1139 = vadd.f32 0.0, %v1138
    %1140 = vmatmul.f32.gmra.mxu0 %v1077
    %v1141 = vpop.f32.mrf.mxu0
    %v1142 = vadd.f32 0.0, %v1141
    %1143 = vmatmul.f32.gmra.mxu0 %v1080
    %v1144 = vpop.f32.mrf.mxu0
    %v1145 = vadd.f32 0.0, %v1144
    %1146 = vmatmul.f32.gmra.mxu0 %v1083
    %v1147 = vpop.f32.mrf.mxu0
    %v1148 = vadd.f32 0.0, %v1147
    %1149 = vmatmul.f32.gmra.mxu0 %v1086
    %v1150 = vpop.f32.mrf.mxu0
    %v1151 = vadd.f32 0.0, %v1150
    %1152 = vmatmul.f32.gmra.mxu0 %v1089
    %v1153 = vpop.f32.mrf.mxu0
    %v1154 = vadd.f32 0.0, %v1153
    %1155 = vmatmul.f32.gmra.mxu0 %v1092
    %v1156 = vpop.f32.mrf.mxu0
    %v1157 = vadd.f32 0.0, %v1156
    %1158 = vmatmul.f32.gmra.mxu0 %v1095
    %v1159 = vpop.f32.mrf.mxu0
    %v1160 = vadd.f32 0.0, %v1159
    %1161 = vmatmul.f32.gmra.mxu0 %v1098
    %v1162 = vpop.f32.mrf.mxu0
    %v1163 = vadd.f32 0.0, %v1162
    %1164 = vmatmul.f32.gmra.mxu0 %v1101
    %v1165 = vpop.f32.mrf.mxu0
    %v1166 = vadd.f32 0.0, %v1165
    %1167 = vdwg.mxu0
    %1184 = vrot.lane.b32.xlu0 %v1121, 64
    %v1185 = vpop.permute.xlu0 %1184
    %1186 = vrot.lane.b32.xlu0 %v1124, 64
    %v1187 = vpop.permute.xlu0 %1186
    %1188 = vrot.lane.b32.xlu0 %v1127, 64
    %v1189 = vpop.permute.xlu0 %1188
    %1190 = vrot.lane.b32.xlu0 %v1130, 64
    %v1191 = vpop.permute.xlu0 %1190
    %1192 = vrot.lane.b32.xlu0 %v1133, 64
    %v1193 = vpop.permute.xlu0 %1192
    %1194 = vrot.lane.b32.xlu0 %v1136, 64
    %v1195 = vpop.permute.xlu0 %1194
    %1196 = vrot.lane.b32.xlu0 %v1139, 64
    %v1197 = vpop.permute.xlu0 %1196
    %1198 = vrot.lane.b32.xlu0 %v1142, 64
    %v1199 = vpop.permute.xlu0 %1198
    %1200 = vrot.lane.b32.xlu0 %v1145, 64
    %v1201 = vpop.permute.xlu0 %1200
    %1202 = vrot.lane.b32.xlu0 %v1148, 64
    %v1203 = vpop.permute.xlu0 %1202
    %1204 = vrot.lane.b32.xlu0 %v1151, 64
    %v1205 = vpop.permute.xlu0 %1204
    %1206 = vrot.lane.b32.xlu0 %v1154, 64
    %v1207 = vpop.permute.xlu0 %1206
    %1208 = vrot.lane.b32.xlu0 %v1157, 64
    %v1209 = vpop.permute.xlu0 %1208
    %1210 = vrot.lane.b32.xlu0 %v1160, 64
    %v1211 = vpop.permute.xlu0 %1210
    %1212 = vrot.lane.b32.xlu0 %v1163, 64
    %v1213 = vpop.permute.xlu0 %1212
    %1214 = vrot.lane.b32.xlu0 %v1166, 64
    %v1215 = vpop.permute.xlu0 %1214
    %v1232 = vadd.f32 %v551, %v1185
    %v1233 = vadd.f32 %v554, %v1187
    %v1234 = vadd.f32 %v557, %v1189
    %v1235 = vadd.f32 %v560, %v1191
    %v1236 = vadd.f32 %v563, %v1193
    %v1237 = vadd.f32 %v566, %v1195
    %v1238 = vadd.f32 %v569, %v1197
    %v1239 = vadd.f32 %v572, %v1199
    %v1240 = vadd.f32 %v575, %v1201
    %v1241 = vadd.f32 %v578, %v1203
    %v1242 = vadd.f32 %v581, %v1205
    %v1243 = vadd.f32 %v584, %v1207
    %v1244 = vadd.f32 %v587, %v1209
    %v1245 = vadd.f32 %v590, %v1211
    %v1246 = vadd.f32 %v593, %v1213
    %v1247 = vadd.f32 %v596, %v1215
    %v1248 = vtanh.pop %v1232
    %v1249 = vtanh.pop %v1233
    %v1250 = vtanh.pop %v1234
    %v1251 = vtanh.pop %v1235
    %v1252 = vtanh.pop %v1236
    %v1253 = vtanh.pop %v1237
    %v1254 = vtanh.pop %v1238
    %v1255 = vtanh.pop %v1239
    %v1256 = vtanh.pop %v1240
    %v1257 = vtanh.pop %v1241
    %v1258 = vtanh.pop %v1242
    %v1259 = vtanh.pop %v1243
    %v1260 = vtanh.pop %v1244
    %v1261 = vtanh.pop %v1245
    %v1262 = vtanh.pop %v1246
    %v1263 = vtanh.pop %v1247
    %v1264 = vsub.f32 1.0, %v809
    %v1265 = vsub.f32 1.0, %v824
    %v1266 = vsub.f32 1.0, %v839
    %v1267 = vsub.f32 1.0, %v854
    %v1268 = vsub.f32 1.0, %v869
    %v1269 = vsub.f32 1.0, %v884
    %v1270 = vsub.f32 1.0, %v899
    %v1271 = vsub.f32 1.0, %v914
    %v1272 = vsub.f32 1.0, %v929
    %v1273 = vsub.f32 1.0, %v944
    %v1274 = vsub.f32 1.0, %v959
    %v1275 = vsub.f32 1.0, %v974
    %v1276 = vsub.f32 1.0, %v989
    %v1277 = vsub.f32 1.0, %v1004
    %v1278 = vsub.f32 1.0, %v1019
    %v1279 = vsub.f32 1.0, %v1034
    %1280 = vrot.lane.b32.xlu0 %v460, 32
    %v1281 = vpop.permute.xlu0 %1280
    %1282 = vrot.lane.b32.xlu0 %v461, 32
    %v1283 = vpop.permute.xlu0 %1282
    %1284 = vrot.lane.b32.xlu0 %v462, 32
    %v1285 = vpop.permute.xlu0 %1284
    %1286 = vrot.lane.b32.xlu0 %v463, 32
    %v1287 = vpop.permute.xlu0 %1286
    %1288 = vrot.lane.b32.xlu0 %v464, 32
    %v1289 = vpop.permute.xlu0 %1288
    %1290 = vrot.lane.b32.xlu0 %v465, 32
    %v1291 = vpop.permute.xlu0 %1290
    %1292 = vrot.lane.b32.xlu0 %v466, 32
    %v1293 = vpop.permute.xlu0 %1292
    %1294 = vrot.lane.b32.xlu0 %v467, 32
    %v1295 = vpop.permute.xlu0 %1294
    %1296 = vrot.lane.b32.xlu0 %v468, 32
    %v1297 = vpop.permute.xlu0 %1296
    %1298 = vrot.lane.b32.xlu0 %v469, 32
    %v1299 = vpop.permute.xlu0 %1298
    %1300 = vrot.lane.b32.xlu0 %v470, 32
    %v1301 = vpop.permute.xlu0 %1300
    %1302 = vrot.lane.b32.xlu0 %v471, 32
    %v1303 = vpop.permute.xlu0 %1302
    %1304 = vrot.lane.b32.xlu0 %v472, 32
    %v1305 = vpop.permute.xlu0 %1304
    %1306 = vrot.lane.b32.xlu0 %v473, 32
    %v1307 = vpop.permute.xlu0 %1306
    %1308 = vrot.lane.b32.xlu0 %v474, 32
    %v1309 = vpop.permute.xlu0 %1308
    %1310 = vrot.lane.b32.xlu0 %v475, 32
    %v1311 = vpop.permute.xlu0 %1310
    %v1328 = vmul.f32 %v1264, %v1281
    %v1329 = vmul.f32 %v1265, %v1283
    %v1330 = vmul.f32 %v1266, %v1285
    %v1331 = vmul.f32 %v1267, %v1287
    %v1332 = vmul.f32 %v1268, %v1289
    %v1333 = vmul.f32 %v1269, %v1291
    %v1334 = vmul.f32 %v1270, %v1293
    %v1335 = vmul.f32 %v1271, %v1295
    %v1336 = vmul.f32 %v1272, %v1297
    %v1337 = vmul.f32 %v1273, %v1299
    %v1338 = vmul.f32 %v1274, %v1301
    %v1339 = vmul.f32 %v1275, %v1303
    %v1340 = vmul.f32 %v1276, %v1305
    %v1341 = vmul.f32 %v1277, %v1307
    %v1342 = vmul.f32 %v1278, %v1309
    %v1343 = vmul.f32 %v1279, %v1311
    %1360 = vrot.lane.b32.xlu0 %v1248, 96
    %v1361 = vpop.permute.xlu0 %1360
    %1362 = vrot.lane.b32.xlu0 %v1249, 96
    %v1363 = vpop.permute.xlu0 %1362
    %1364 = vrot.lane.b32.xlu0 %v1250, 96
    %v1365 = vpop.permute.xlu0 %1364
    %1366 = vrot.lane.b32.xlu0 %v1251, 96
    %v1367 = vpop.permute.xlu0 %1366
    %1368 = vrot.lane.b32.xlu0 %v1252, 96
    %v1369 = vpop.permute.xlu0 %1368
    %1370 = vrot.lane.b32.xlu0 %v1253, 96
    %v1371 = vpop.permute.xlu0 %1370
    %1372 = vrot.lane.b32.xlu0 %v1254, 96
    %v1373 = vpop.permute.xlu0 %1372
    %1374 = vrot.lane.b32.xlu0 %v1255, 96
    %v1375 = vpop.permute.xlu0 %1374
    %1376 = vrot.lane.b32.xlu0 %v1256, 96
    %v1377 = vpop.permute.xlu0 %1376
    %1378 = vrot.lane.b32.xlu0 %v1257, 96
    %v1379 = vpop.permute.xlu0 %1378
    %1380 = vrot.lane.b32.xlu0 %v1258, 96
    %v1381 = vpop.permute.xlu0 %1380
    %1382 = vrot.lane.b32.xlu0 %v1259, 96
    %v1383 = vpop.permute.xlu0 %1382
    %1384 = vrot.lane.b32.xlu0 %v1260, 96
    %v1385 = vpop.permute.xlu0 %1384
    %1386 = vrot.lane.b32.xlu0 %v1261, 96
    %v1387 = vpop.permute.xlu0 %1386
    %1388 = vrot.lane.b32.xlu0 %v1262, 96
    %v1389 = vpop.permute.xlu0 %1388
    %1390 = vrot.lane.b32.xlu0 %v1263, 96
    %v1391 = vpop.permute.xlu0 %1390
    %v1408 = vmul.f32 %v809, %v1361
    %v1409 = vmul.f32 %v824, %v1363
    %v1410 = vmul.f32 %v839, %v1365
    %v1411 = vmul.f32 %v854, %v1367
    %v1412 = vmul.f32 %v869, %v1369
    %v1413 = vmul.f32 %v884, %v1371
    %v1414 = vmul.f32 %v899, %v1373
    %v1415 = vmul.f32 %v914, %v1375
    %v1416 = vmul.f32 %v929, %v1377
    %v1417 = vmul.f32 %v944, %v1379
    %v1418 = vmul.f32 %v959, %v1381
    %v1419 = vmul.f32 %v974, %v1383
    %v1420 = vmul.f32 %v989, %v1385
    %v1421 = vmul.f32 %v1004, %v1387
    %v1422 = vmul.f32 %v1019, %v1389
    %v1423 = vmul.f32 %v1034, %v1391
    %v1424 = vadd.f32 %v1328, %v1408
    %v1425 = vadd.f32 %v1329, %v1409
    %v1426 = vadd.f32 %v1330, %v1410
    %v1427 = vadd.f32 %v1331, %v1411
    %v1428 = vadd.f32 %v1332, %v1412
    %v1429 = vadd.f32 %v1333, %v1413
    %v1430 = vadd.f32 %v1334, %v1414
    %v1431 = vadd.f32 %v1335, %v1415
    %v1432 = vadd.f32 %v1336, %v1416
    %v1433 = vadd.f32 %v1337, %v1417
    %v1434 = vadd.f32 %v1338, %v1418
    %v1435 = vadd.f32 %v1339, %v1419
    %v1436 = vadd.f32 %v1340, %v1420
    %v1437 = vadd.f32 %v1341, %v1421
    %v1438 = vadd.f32 %v1342, %v1422
    %v1439 = vadd.f32 %v1343, %v1423
    %1456 = vrot.lane.b32.xlu0 %v1424, 96
    %v1457 = vpop.permute.xlu0 %1456
    %1458 = vrot.lane.b32.xlu0 %v1425, 96
    %v1459 = vpop.permute.xlu0 %1458
    %1460 = vrot.lane.b32.xlu0 %v1426, 96
    %v1461 = vpop.permute.xlu0 %1460
    %1462 = vrot.lane.b32.xlu0 %v1427, 96
    %v1463 = vpop.permute.xlu0 %1462
    %1464 = vrot.lane.b32.xlu0 %v1428, 96
    %v1465 = vpop.permute.xlu0 %1464
    %1466 = vrot.lane.b32.xlu0 %v1429, 96
    %v1467 = vpop.permute.xlu0 %1466
    %1468 = vrot.lane.b32.xlu0 %v1430, 96
    %v1469 = vpop.permute.xlu0 %1468
    %1470 = vrot.lane.b32.xlu0 %v1431, 96
    %v1471 = vpop.permute.xlu0 %1470
    %1472 = vrot.lane.b32.xlu0 %v1432, 96
    %v1473 = vpop.permute.xlu0 %1472
    %1474 = vrot.lane.b32.xlu0 %v1433, 96
    %v1475 = vpop.permute.xlu0 %1474
    %1476 = vrot.lane.b32.xlu0 %v1434, 96
    %v1477 = vpop.permute.xlu0 %1476
    %1478 = vrot.lane.b32.xlu0 %v1435, 96
    %v1479 = vpop.permute.xlu0 %1478
    %1480 = vrot.lane.b32.xlu0 %v1436, 96
    %v1481 = vpop.permute.xlu0 %1480
    %1482 = vrot.lane.b32.xlu0 %v1437, 96
    %v1483 = vpop.permute.xlu0 %1482
    %1484 = vrot.lane.b32.xlu0 %v1438, 96
    %v1485 = vpop.permute.xlu0 %1484
    %1486 = vrot.lane.b32.xlu0 %v1439, 96
    %v1487 = vpop.permute.xlu0 %1486
    %1504 = vst.msk [vmem:[#allocation7] sm:$0xff] %vm484, %v1457
    %1505 = vst.msk [vmem:[#allocation7 + $0x8] sm:$0xff] %vm484, %v1459
    %1506 = vst.msk [vmem:[#allocation7 + $0x10] sm:$0xff] %vm484, %v1461
    %1507 = vst.msk [vmem:[#allocation7 + $0x18] sm:$0xff] %vm484, %v1463
    %1508 = vst.msk [vmem:[#allocation7 + $0x20] sm:$0xff] %vm484, %v1465
    %1509 = vst.msk [vmem:[#allocation7 + $0x28] sm:$0xff] %vm484, %v1467
    %1510 = vst.msk [vmem:[#allocation7 + $0x30] sm:$0xff] %vm484, %v1469
    %1511 = vst.msk [vmem:[#allocation7 + $0x38] sm:$0xff] %vm484, %v1471
    %1512 = vst.msk [vmem:[#allocation7 + $0x40] sm:$0xff] %vm484, %v1473
    %1513 = vst.msk [vmem:[#allocation7 + $0x48] sm:$0xff] %vm484, %v1475
    %1514 = vst.msk [vmem:[#allocation7 + $0x50] sm:$0xff] %vm484, %v1477
    %1515 = vst.msk [vmem:[#allocation7 + $0x58] sm:$0xff] %vm484, %v1479
    %1516 = vst.msk [vmem:[#allocation7 + $0x60] sm:$0xff] %vm484, %v1481
    %1517 = vst.msk [vmem:[#allocation7 + $0x68] sm:$0xff] %vm484, %v1483
    %1518 = vst.msk [vmem:[#allocation7 + $0x70] sm:$0xff] %vm484, %v1485
    %1519 = vst.msk [vmem:[#allocation7 + $0x78] sm:$0xff] %vm484, %v1487
    // Predicated region
    $region38: #{tpu_custom_call.1} parent=1 // pred_check
      _
    $region39: #{tpu_custom_call.1} parent=1 // pred_check_branch
      %1521 = sbr.rel (0) target = $region41
    $region40: #{tpu_custom_call.1} parent=1 // pred_region
      %1523 = vsyncadd [#allocation4], 0
      %s1524 = sshll.u32 [#allocation7], 4
      %s1525 = int_to_ptr.vmem [resolvable:$true] %s1524
      %s1526 = sshll.u32 %s7, 4
      %s1527 = int_to_ptr.hbm [resolvable:$true] %s1526
      %1532 = dma.vmem_to_hbm [thread:$0]  %s1525, 2048, %s1527, [#allocation4], 128, 128, 8
    $region41: #{tpu_custom_call.1} parent=1 // pred_fallthru
      _
    // Predicated region
    $region42: #{tpu_custom_call.1} parent=1 // pred_check
      _
    $region43: #{tpu_custom_call.1} parent=1 // pred_check_branch
      %1534 = sbr.rel (0) target = $region45
    $region44: #{tpu_custom_call.1} parent=1 // pred_region
      %1536 = dma.done [#allocation4], 2048
    $region45: #{tpu_custom_call.1} parent=1 // pred_fallthru
      _
    %1537 = vsyncpa [#allocation3], 1
    %1538 = vsyncpa [#allocation6], 1
    %1539 = vsyncpa [#allocation4], 1

</llo_original>
